<compile_context>
chip_gen: v6e
topology: v6e:2x2x1
jax: 0.10.0
libtpu: 0.0.40
codegen_flags: <defaults>
</compile_context>

<pallas_src>
import functools

import jax
import jax.numpy as jnp
from jax import lax
from jax.experimental import pallas as pl
from jax.experimental.pallas import tpu as pltpu


def _round_up(x, m):
    return ((x + m - 1) // m) * m


def time_lstm_kernel(x_ref, t_ref, w_gate_ref, b_gate_ref, w_d_ref, b_d_ref,
                     out_ref, h_sc, c_sc, *, chunk, hidden_p):
    # Reset the recurrent state at the first seq-chunk of each batch tile.
    @pl.when(pl.program_id(1) == 0)
    def _():
        h_sc[...] = jnp.zeros_like(h_sc)
        c_sc[...] = jnp.zeros_like(c_sc)

    # Hoist resident weight/bias loads out of the timestep loop.
    w_gate = w_gate_ref[...]          # (Hp+Ep, 4*Hp)  bf16 (or f32)
    b_gate = b_gate_ref[...]          # (1, 4*Hp)      f32
    w_d = w_d_ref[...]                # (Hp, Hp)       bf16 (or f32)
    b_d = b_d_ref[...]                # (1, Hp)        f32
    cdt = w_gate.dtype                # matmul operand dtype

    def step(i, carry):
        h, c = carry                  # (tb, Hp) f32 each
        x = x_ref[i]                  # (tb, Ep) in cdt
        t = t_ref[i]                  # (tb, 1)  f32

        # c_s1 = tanh(W_d(c)); time-decay adjustment of the cell state.
        c_s1 = jnp.tanh(
            jnp.dot(c.astype(cdt), w_d, preferred_element_type=jnp.float32)
            + b_d)
        c_adj = (c - c_s1) + c_s1 * t

        # Fused gates: [h, x] @ [W_all^T ; U_all^T] + (W_all_b + U_all_b).
        hx = jnp.concatenate([h.astype(cdt), x], axis=-1)
        outs = jnp.dot(hx, w_gate, preferred_element_type=jnp.float32) + b_gate

        # torch.chunk(outs, 4, 1) -> f, i, o, c_tmp ; all sigmoid (as in the
        # reference module, including the candidate cell gate).
        f = jax.nn.sigmoid(outs[:, 0 * hidden_p:1 * hidden_p])
        gi = jax.nn.sigmoid(outs[:, 1 * hidden_p:2 * hidden_p])
        o = jax.nn.sigmoid(outs[:, 2 * hidden_p:3 * hidden_p])
        c_tmp = jax.nn.sigmoid(outs[:, 3 * hidden_p:4 * hidden_p])

        c_new = f * c_adj + gi * c_tmp
        h_new = o * jnp.tanh(c_new)

        out_ref[i] = h_new
        return h_new, c_new

    h_last, c_last = lax.fori_loop(0, chunk, step, (h_sc[...], c_sc[...]),
                                   unroll=True)
    h_sc[...] = h_last
    c_sc[...] = c_last


def time_lstm_forward(inputs, timestamps, params, reverse=False,
                      chunk=8, mm_dtype=jnp.bfloat16):
    """inputs: (b, seq, embed), timestamps: (b, seq) -> (b, seq, hidden)."""
    b, seq, embed = inputs.shape
    hidden = params["W_d_w"].shape[0]

    # Padded (sublane/lane-aligned) problem sizes.
    bp = _round_up(b, 8)
    ep = _round_up(embed, 128)
    hp = _round_up(hidden, 128)
    seq_p = _round_up(seq, chunk)
    n_chunks = seq_p // chunk

    # seq-major, zero-padded activations.
    x = jnp.zeros((seq_p, bp, ep), mm_dtype)
    x = x.at[:seq, :b, :embed].set(
        jnp.transpose(inputs, (1, 0, 2)).astype(mm_dtype))
    t = jnp.zeros((seq_p, bp, 1), jnp.float32)
    t = t.at[:seq, :b, 0].set(jnp.transpose(timestamps, (1, 0)).astype(jnp.float32))

    # Fused gate weight [W_all^T ; U_all^T] laid out as 4 lane-aligned gate
    # blocks of hp columns each; bias = W_all_b + U_all_b (pre-summed).
    # nn.Linear stores weight as (out, in); the kernel computes x @ W^T + b.
    wall_t = params["W_all_w"].T                      # (hidden, 4*hidden)
    uall_t = params["U_all_w"].T                      # (embed,  4*hidden)
    bias = params["W_all_b"] + params["U_all_b"]      # (4*hidden,)
    w_gate = jnp.zeros((hp + ep, 4 * hp), jnp.float32)
    b_gate = jnp.zeros((1, 4 * hp), jnp.float32)
    for g in range(4):
        w_gate = w_gate.at[:hidden, g * hp:g * hp + hidden].set(
            wall_t[:, g * hidden:(g + 1) * hidden])
        w_gate = w_gate.at[hp:hp + embed, g * hp:g * hp + hidden].set(
            uall_t[:, g * hidden:(g + 1) * hidden])
        b_gate = b_gate.at[0, g * hp:g * hp + hidden].set(
            bias[g * hidden:(g + 1) * hidden])
    w_gate = w_gate.astype(mm_dtype)

    w_d = (jnp.zeros((hp, hp), jnp.float32)
           .at[:hidden, :hidden].set(params["W_d_w"].T).astype(mm_dtype))
    b_d = jnp.zeros((1, hp), jnp.float32).at[0, :hidden].set(params["W_d_b"])

    # One batch tile here; on v7x set tb = bp // 2 (multiple of 8) to shard the
    # parallel batch axis across the two TensorCores.
    tb = bp

    kernel = functools.partial(time_lstm_kernel, chunk=chunk, hidden_p=hp)

    out_sbh = pl.pallas_call(
        kernel,
        out_shape=jax.ShapeDtypeStruct((seq_p, bp, hp), jnp.float32),
        grid_spec=pltpu.PrefetchScalarGridSpec(
            num_scalar_prefetch=0,
            grid=(bp // tb, n_chunks),
            in_specs=[
                pl.BlockSpec((chunk, tb, ep), lambda bi, si: (si, bi, 0)),
                pl.BlockSpec((chunk, tb, 1), lambda bi, si: (si, bi, 0)),
                # Weights/biases are grid-invariant (constant index_map), so
                # Pallas only DMAs them once.
                pl.BlockSpec((hp + ep, 4 * hp), lambda bi, si: (0, 0)),
                pl.BlockSpec((1, 4 * hp), lambda bi, si: (0, 0)),
                pl.BlockSpec((hp, hp), lambda bi, si: (0, 0)),
                pl.BlockSpec((1, hp), lambda bi, si: (0, 0)),
            ],
            out_specs=pl.BlockSpec((chunk, tb, hp), lambda bi, si: (si, bi, 0)),
            scratch_shapes=[
                pltpu.VMEM((tb, hp), jnp.float32),   # h state
                pltpu.VMEM((tb, hp), jnp.float32),   # c state
            ],
        ),
        compiler_params=pltpu.CompilerParams(
            # batch tiles independent; seq chunks are the recurrence.
            dimension_semantics=("parallel", "arbitrary"),
            vmem_limit_bytes=32 * 1024 * 1024,
        ),
    )(x, t, w_gate, b_gate, w_d, b_d)

    out = jnp.transpose(out_sbh[:seq, :b, :hidden], (1, 0, 2))  # (b, seq, hidden)
    if reverse:
        # The PyTorch module only reverses the output order (the recurrence
        # itself always runs in forward order).
        out = out[:, ::-1, :]
    return out


def time_lstm_reference(inputs, timestamps, params, reverse=False):
    """Pure-JAX reference matching the PyTorch forward, for validation."""
    b, seq, _ = inputs.shape
    hidden = params["W_d_w"].shape[0]
    h = jnp.zeros((b, hidden), jnp.float32)
    c = jnp.zeros((b, hidden), jnp.float32)
    outs_list = []
    for s in range(seq):
        c_s1 = jnp.tanh(c @ params["W_d_w"].T + params["W_d_b"])
        c_s2 = c_s1 * timestamps[:, s:s + 1]
        c_adj = (c - c_s1) + c_s2
        outs = (h @ params["W_all_w"].T + params["W_all_b"]
                + inputs[:, s] @ params["U_all_w"].T + params["U_all_b"])
        f, i, o, c_tmp = jnp.split(outs, 4, axis=1)
        f, i, o, c_tmp = map(jax.nn.sigmoid, (f, i, o, c_tmp))
        c = f * c_adj + i * c_tmp
        h = o * jnp.tanh(c)
        outs_list.append(h)
    if reverse:
        outs_list.reverse()
    return jnp.stack(outs_list, axis=1)


def init_params(key, input_size, hidden_size):
    """Deterministic nn.Linear-style init (uniform +/- 1/sqrt(fan_in))."""
    ks = jax.random.split(key, 6)

    def lin(kw, kb, out_f, in_f):
        bound = 1.0 / jnp.sqrt(in_f)
        w = jax.random.uniform(kw, (out_f, in_f), jnp.float32, -bound, bound)
        b = jax.random.uniform(kb, (out_f,), jnp.float32, -bound, bound)
        return w, b

    W_all_w, W_all_b = lin(ks[0], ks[1], 4 * hidden_size, hidden_size)
    U_all_w, U_all_b = lin(ks[2], ks[3], 4 * hidden_size, input_size)
    W_d_w, W_d_b = lin(ks[4], ks[5], hidden_size, hidden_size)
    return dict(W_all_w=W_all_w, W_all_b=W_all_b,
                U_all_w=U_all_w, U_all_b=U_all_b,
                W_d_w=W_d_w, W_d_b=W_d_b)


if __name__ == "__main__":
    batch, seq, input_size, hidden_size = 4, 8, 16, 32

    key = jax.random.PRNGKey(0)
    k_x, k_t, k_p = jax.random.split(key, 3)
    inputs = jax.random.normal(k_x, (batch, seq, input_size), jnp.float32)
    timestamps = jax.random.uniform(k_t, (batch, seq), jnp.float32, 0.0, 2.0)
    params = init_params(k_p, input_size, hidden_size)

    out = time_lstm_forward(inputs, timestamps, params, reverse=False)
    out = jax.block_until_ready(out)

    ref = time_lstm_reference(inputs, timestamps, params, reverse=False)
    assert out.shape == (batch, seq, hidden_size)
    assert jnp.allclose(out, ref, atol=2e-2, rtol=2e-2), (
        "max abs err = %f" % float(jnp.max(jnp.abs(out - ref))))

    out_r = jax.block_until_ready(
        time_lstm_forward(inputs, timestamps, params, reverse=True))
    ref_r = time_lstm_reference(inputs, timestamps, params, reverse=True)
    assert jnp.allclose(out_r, ref_r, atol=2e-2, rtol=2e-2)

    print("KERNEL_OK")
</pallas_src>

<mosaic_0001>
module attributes {stable_mosaic.version = 11 : i64} {
  func.func @time_lstm_kernel(%arg0: i32, %arg1: i32, %arg2: memref<8x8x128xbf16, #tpu.memory_space<vmem>>, %arg3: memref<8x8x1xf32, #tpu.memory_space<vmem>>, %arg4: memref<256x512xbf16, #tpu.memory_space<vmem>>, %arg5: memref<1x512xf32, #tpu.memory_space<vmem>>, %arg6: memref<128x128xbf16, #tpu.memory_space<vmem>>, %arg7: memref<1x128xf32, #tpu.memory_space<vmem>>, %arg8: memref<8x8x128xf32, #tpu.memory_space<vmem>>, %arg9: memref<8x128xf32, #tpu.memory_space<vmem>>, %arg10: memref<8x128xf32, #tpu.memory_space<vmem>>) attributes {dimension_semantics = [#tpu.dimension_semantics<parallel>, #tpu.dimension_semantics<arbitrary>], iteration_bounds = array<i64: 1, 1>, scalar_prefetch = 0 : i64, scratch_operands = 2 : i64, tpu.core_type = #tpu.core_type<tc>, window_params = [{transform_indices = @transform_0, window_bounds = array<i64: 8, 8, 128>}, {transform_indices = @transform_1, window_bounds = array<i64: 8, 8, 1>}, {pipeline_mode = #tpu.pipeline_mode<synchronous>, transform_indices = @transform_2, window_bounds = array<i64: 256, 512>}, {pipeline_mode = #tpu.pipeline_mode<synchronous>, transform_indices = @transform_3, window_bounds = array<i64: 1, 512>}, {pipeline_mode = #tpu.pipeline_mode<synchronous>, transform_indices = @transform_4, window_bounds = array<i64: 128, 128>}, {pipeline_mode = #tpu.pipeline_mode<synchronous>, transform_indices = @transform_5, window_bounds = array<i64: 1, 128>}, {transform_indices = @transform_6, window_bounds = array<i64: 8, 8, 128>}]} {
    %c0_i32 = arith.constant 0 : i32
    %0 = arith.cmpi eq, %arg1, %c0_i32 : i32
    %1 = arith.extui %0 : i1 to i32
    %c0_i32_0 = arith.constant 0 : i32
    %2 = arith.cmpi ne, %1, %c0_i32_0 : i32
    scf.if %2 {
      %cst_112 = arith.constant 0.000000e+00 : f32
      %435 = vector.broadcast %cst_112 : f32 to vector<8x128xf32>
      %c0_113 = arith.constant 0 : index
      %c0_114 = arith.constant 0 : index
      %436 = vector.load %arg9[%c0_113, %c0_114] : memref<8x128xf32, #tpu.memory_space<vmem>>, vector<8x128xf32>
      tpu.vector_store %arg9[%c0_113, %c0_114], %435 {strides = array<i32>} : memref<8x128xf32, #tpu.memory_space<vmem>>, vector<8x128xf32>,
      %cst_115 = arith.constant 0.000000e+00 : f32
      %437 = vector.broadcast %cst_115 : f32 to vector<8x128xf32>
      %c0_116 = arith.constant 0 : index
      %c0_117 = arith.constant 0 : index
      %438 = vector.load %arg10[%c0_116, %c0_117] : memref<8x128xf32, #tpu.memory_space<vmem>>, vector<8x128xf32>
      tpu.vector_store %arg10[%c0_116, %c0_117], %437 {strides = array<i32>} : memref<8x128xf32, #tpu.memory_space<vmem>>, vector<8x128xf32>,
    } else {
    }
    %c0 = arith.constant 0 : index
    %c0_1 = arith.constant 0 : index
    %3 = vector.load %arg4[%c0, %c0_1] : memref<256x512xbf16, #tpu.memory_space<vmem>>, vector<256x512xbf16>
    %c0_2 = arith.constant 0 : index
    %c0_3 = arith.constant 0 : index
    %4 = vector.load %arg5[%c0_2, %c0_3] : memref<1x512xf32, #tpu.memory_space<vmem>>, vector<1x512xf32>
    %c0_4 = arith.constant 0 : index
    %c0_5 = arith.constant 0 : index
    %5 = vector.load %arg6[%c0_4, %c0_5] : memref<128x128xbf16, #tpu.memory_space<vmem>>, vector<128x128xbf16>
    %c0_6 = arith.constant 0 : index
    %c0_7 = arith.constant 0 : index
    %6 = vector.load %arg7[%c0_6, %c0_7] : memref<1x128xf32, #tpu.memory_space<vmem>>, vector<1x128xf32>
    %c0_8 = arith.constant 0 : index
    %c0_9 = arith.constant 0 : index
    %7 = vector.load %arg9[%c0_8, %c0_9] : memref<8x128xf32, #tpu.memory_space<vmem>>, vector<8x128xf32>
    %c0_10 = arith.constant 0 : index
    %c0_11 = arith.constant 0 : index
    %8 = vector.load %arg10[%c0_10, %c0_11] : memref<8x128xf32, #tpu.memory_space<vmem>>, vector<8x128xf32>
    %c0_i32_12 = arith.constant 0 : i32
    %9 = arith.index_cast %c0_i32_12 : i32 to index
    %c0_13 = arith.constant 0 : index
    %c0_14 = arith.constant 0 : index
    %10 = vector.load %arg2[%9, %c0_13, %c0_14] : memref<8x8x128xbf16, #tpu.memory_space<vmem>>, vector<1x8x128xbf16>
    %11 = vector.shape_cast %10 : vector<1x8x128xbf16> to vector<8x128xbf16>
    %12 = arith.index_cast %c0_i32_12 : i32 to index
    %c0_15 = arith.constant 0 : index
    %c0_16 = arith.constant 0 : index
    %13 = vector.load %arg3[%12, %c0_15, %c0_16] : memref<8x8x1xf32, #tpu.memory_space<vmem>>, vector<1x8x1xf32>
    %14 = vector.shape_cast %13 : vector<1x8x1xf32> to vector<8x1xf32>
    %15 = arith.truncf %8 : vector<8x128xf32> to vector<8x128xbf16>
    %cst = arith.constant dense<0.000000e+00> : vector<8x128xf32>
    %16 = tpu.matmul %15, %5, %cst {dimension_numbers = #tpu.dot_dimension_numbers<[1], [0], [0], [1], [0, 0, 1, 1], [], []>} : vector<8x128xbf16>, vector<128x128xbf16>, vector<8x128xf32> -> vector<8x128xf32>
    %17 = vector.broadcast %6 : vector<1x128xf32> to vector<8x128xf32>
    %18 = arith.addf %16, %17 : vector<8x128xf32>
    %19 = math.tanh %18 : vector<8x128xf32>
    %20 = arith.subf %8, %19 : vector<8x128xf32>
    %21 = vector.broadcast %14 : vector<8x1xf32> to vector<8x128xf32>
    %22 = arith.mulf %19, %21 : vector<8x128xf32>
    %23 = arith.addf %20, %22 : vector<8x128xf32>
    %24 = arith.truncf %7 : vector<8x128xf32> to vector<8x128xbf16>
    %25 = tpu.concatenate %24, %11 in 1 : vector<8x128xbf16>, vector<8x128xbf16> -> vector<8x256xbf16>
    %cst_17 = arith.constant dense<0.000000e+00> : vector<8x512xf32>
    %26 = tpu.matmul %25, %3, %cst_17 {dimension_numbers = #tpu.dot_dimension_numbers<[1], [0], [0], [1], [0, 0, 1, 1], [], []>} : vector<8x256xbf16>, vector<256x512xbf16>, vector<8x512xf32> -> vector<8x512xf32>
    %27 = vector.broadcast %4 : vector<1x512xf32> to vector<8x512xf32>
    %28 = arith.addf %26, %27 : vector<8x512xf32>
    %29 = vector.extract_strided_slice %28 {offsets = [0, 0], sizes = [8, 128], strides = [1, 1]} : vector<8x512xf32> to vector<8x128xf32>
    %30 = arith.negf %29 : vector<8x128xf32>
    %31 = math.exp %30 : vector<8x128xf32>
    %cst_18 = arith.constant 1.000000e+00 : f32
    %32 = vector.broadcast %cst_18 : f32 to vector<8x128xf32>
    %33 = arith.addf %32, %31 : vector<8x128xf32>
    %34 = arith.divf %32, %33 : vector<8x128xf32>
    %35 = vector.extract_strided_slice %28 {offsets = [0, 128], sizes = [8, 128], strides = [1, 1]} : vector<8x512xf32> to vector<8x128xf32>
    %36 = arith.negf %35 : vector<8x128xf32>
    %37 = math.exp %36 : vector<8x128xf32>
    %cst_19 = arith.constant 1.000000e+00 : f32
    %38 = vector.broadcast %cst_19 : f32 to vector<8x128xf32>
    %39 = arith.addf %38, %37 : vector<8x128xf32>
    %40 = arith.divf %38, %39 : vector<8x128xf32>
    %41 = vector.extract_strided_slice %28 {offsets = [0, 256], sizes = [8, 128], strides = [1, 1]} : vector<8x512xf32> to vector<8x128xf32>
    %42 = arith.negf %41 : vector<8x128xf32>
    %43 = math.exp %42 : vector<8x128xf32>
    %cst_20 = arith.constant 1.000000e+00 : f32
    %44 = vector.broadcast %cst_20 : f32 to vector<8x128xf32>
    %45 = arith.addf %44, %43 : vector<8x128xf32>
    %46 = arith.divf %44, %45 : vector<8x128xf32>
    %47 = vector.extract_strided_slice %28 {offsets = [0, 384], sizes = [8, 128], strides = [1, 1]} : vector<8x512xf32> to vector<8x128xf32>
    %48 = arith.negf %47 : vector<8x128xf32>
    %49 = math.exp %48 : vector<8x128xf32>
    %cst_21 = arith.constant 1.000000e+00 : f32
    %50 = vector.broadcast %cst_21 : f32 to vector<8x128xf32>
    %51 = arith.addf %50, %49 : vector<8x128xf32>
    %52 = arith.divf %50, %51 : vector<8x128xf32>
    %53 = arith.mulf %34, %23 : vector<8x128xf32>
    %54 = arith.mulf %40, %52 : vector<8x128xf32>
    %55 = arith.addf %53, %54 : vector<8x128xf32>
    %56 = math.tanh %55 : vector<8x128xf32>
    %57 = arith.mulf %46, %56 : vector<8x128xf32>
    %58 = arith.index_cast %c0_i32_12 : i32 to index
    %c0_22 = arith.constant 0 : index
    %c0_23 = arith.constant 0 : index
    %59 = vector.load %arg8[%58, %c0_22, %c0_23] : memref<8x8x128xf32, #tpu.memory_space<vmem>>, vector<1x8x128xf32>
    %60 = vector.shape_cast %59 : vector<1x8x128xf32> to vector<8x128xf32>
    %61 = vector.shape_cast %57 : vector<8x128xf32> to vector<1x8x128xf32>
    tpu.vector_store %arg8[%58, %c0_22, %c0_23], %61 {strides = array<i32>} : memref<8x8x128xf32, #tpu.memory_space<vmem>>, vector<1x8x128xf32>,
    %c1_i32 = arith.constant 1 : i32
    %62 = arith.index_cast %c1_i32 : i32 to index
    %c0_24 = arith.constant 0 : index
    %c0_25 = arith.constant 0 : index
    %63 = vector.load %arg2[%62, %c0_24, %c0_25] : memref<8x8x128xbf16, #tpu.memory_space<vmem>>, vector<1x8x128xbf16>
    %64 = vector.shape_cast %63 : vector<1x8x128xbf16> to vector<8x128xbf16>
    %65 = arith.index_cast %c1_i32 : i32 to index
    %c0_26 = arith.constant 0 : index
    %c0_27 = arith.constant 0 : index
    %66 = vector.load %arg3[%65, %c0_26, %c0_27] : memref<8x8x1xf32, #tpu.memory_space<vmem>>, vector<1x8x1xf32>
    %67 = vector.shape_cast %66 : vector<1x8x1xf32> to vector<8x1xf32>
    %68 = arith.truncf %55 : vector<8x128xf32> to vector<8x128xbf16>
    %cst_28 = arith.constant dense<0.000000e+00> : vector<8x128xf32>
    %69 = tpu.matmul %68, %5, %cst_28 {dimension_numbers = #tpu.dot_dimension_numbers<[1], [0], [0], [1], [0, 0, 1, 1], [], []>} : vector<8x128xbf16>, vector<128x128xbf16>, vector<8x128xf32> -> vector<8x128xf32>
    %70 = vector.broadcast %6 : vector<1x128xf32> to vector<8x128xf32>
    %71 = arith.addf %69, %70 : vector<8x128xf32>
    %72 = math.tanh %71 : vector<8x128xf32>
    %73 = arith.subf %55, %72 : vector<8x128xf32>
    %74 = vector.broadcast %67 : vector<8x1xf32> to vector<8x128xf32>
    %75 = arith.mulf %72, %74 : vector<8x128xf32>
    %76 = arith.addf %73, %75 : vector<8x128xf32>
    %77 = arith.truncf %57 : vector<8x128xf32> to vector<8x128xbf16>
    %78 = tpu.concatenate %77, %64 in 1 : vector<8x128xbf16>, vector<8x128xbf16> -> vector<8x256xbf16>
    %cst_29 = arith.constant dense<0.000000e+00> : vector<8x512xf32>
    %79 = tpu.matmul %78, %3, %cst_29 {dimension_numbers = #tpu.dot_dimension_numbers<[1], [0], [0], [1], [0, 0, 1, 1], [], []>} : vector<8x256xbf16>, vector<256x512xbf16>, vector<8x512xf32> -> vector<8x512xf32>
    %80 = vector.broadcast %4 : vector<1x512xf32> to vector<8x512xf32>
    %81 = arith.addf %79, %80 : vector<8x512xf32>
    %82 = vector.extract_strided_slice %81 {offsets = [0, 0], sizes = [8, 128], strides = [1, 1]} : vector<8x512xf32> to vector<8x128xf32>
    %83 = arith.negf %82 : vector<8x128xf32>
    %84 = math.exp %83 : vector<8x128xf32>
    %cst_30 = arith.constant 1.000000e+00 : f32
    %85 = vector.broadcast %cst_30 : f32 to vector<8x128xf32>
    %86 = arith.addf %85, %84 : vector<8x128xf32>
    %87 = arith.divf %85, %86 : vector<8x128xf32>
    %88 = vector.extract_strided_slice %81 {offsets = [0, 128], sizes = [8, 128], strides = [1, 1]} : vector<8x512xf32> to vector<8x128xf32>
    %89 = arith.negf %88 : vector<8x128xf32>
    %90 = math.exp %89 : vector<8x128xf32>
    %cst_31 = arith.constant 1.000000e+00 : f32
    %91 = vector.broadcast %cst_31 : f32 to vector<8x128xf32>
    %92 = arith.addf %91, %90 : vector<8x128xf32>
    %93 = arith.divf %91, %92 : vector<8x128xf32>
    %94 = vector.extract_strided_slice %81 {offsets = [0, 256], sizes = [8, 128], strides = [1, 1]} : vector<8x512xf32> to vector<8x128xf32>
    %95 = arith.negf %94 : vector<8x128xf32>
    %96 = math.exp %95 : vector<8x128xf32>
    %cst_32 = arith.constant 1.000000e+00 : f32
    %97 = vector.broadcast %cst_32 : f32 to vector<8x128xf32>
    %98 = arith.addf %97, %96 : vector<8x128xf32>
    %99 = arith.divf %97, %98 : vector<8x128xf32>
    %100 = vector.extract_strided_slice %81 {offsets = [0, 384], sizes = [8, 128], strides = [1, 1]} : vector<8x512xf32> to vector<8x128xf32>
    %101 = arith.negf %100 : vector<8x128xf32>
    %102 = math.exp %101 : vector<8x128xf32>
    %cst_33 = arith.constant 1.000000e+00 : f32
    %103 = vector.broadcast %cst_33 : f32 to vector<8x128xf32>
    %104 = arith.addf %103, %102 : vector<8x128xf32>
    %105 = arith.divf %103, %104 : vector<8x128xf32>
    %106 = arith.mulf %87, %76 : vector<8x128xf32>
    %107 = arith.mulf %93, %105 : vector<8x128xf32>
    %108 = arith.addf %106, %107 : vector<8x128xf32>
    %109 = math.tanh %108 : vector<8x128xf32>
    %110 = arith.mulf %99, %109 : vector<8x128xf32>
    %111 = arith.index_cast %c1_i32 : i32 to index
    %c0_34 = arith.constant 0 : index
    %c0_35 = arith.constant 0 : index
    %112 = vector.load %arg8[%111, %c0_34, %c0_35] : memref<8x8x128xf32, #tpu.memory_space<vmem>>, vector<1x8x128xf32>
    %113 = vector.shape_cast %112 : vector<1x8x128xf32> to vector<8x128xf32>
    %114 = vector.shape_cast %110 : vector<8x128xf32> to vector<1x8x128xf32>
    tpu.vector_store %arg8[%111, %c0_34, %c0_35], %114 {strides = array<i32>} : memref<8x8x128xf32, #tpu.memory_space<vmem>>, vector<1x8x128xf32>,
    %c2_i32 = arith.constant 2 : i32
    %115 = arith.index_cast %c2_i32 : i32 to index
    %c0_36 = arith.constant 0 : index
    %c0_37 = arith.constant 0 : index
    %116 = vector.load %arg2[%115, %c0_36, %c0_37] : memref<8x8x128xbf16, #tpu.memory_space<vmem>>, vector<1x8x128xbf16>
    %117 = vector.shape_cast %116 : vector<1x8x128xbf16> to vector<8x128xbf16>
    %118 = arith.index_cast %c2_i32 : i32 to index
    %c0_38 = arith.constant 0 : index
    %c0_39 = arith.constant 0 : index
    %119 = vector.load %arg3[%118, %c0_38, %c0_39] : memref<8x8x1xf32, #tpu.memory_space<vmem>>, vector<1x8x1xf32>
    %120 = vector.shape_cast %119 : vector<1x8x1xf32> to vector<8x1xf32>
    %121 = arith.truncf %108 : vector<8x128xf32> to vector<8x128xbf16>
    %cst_40 = arith.constant dense<0.000000e+00> : vector<8x128xf32>
    %122 = tpu.matmul %121, %5, %cst_40 {dimension_numbers = #tpu.dot_dimension_numbers<[1], [0], [0], [1], [0, 0, 1, 1], [], []>} : vector<8x128xbf16>, vector<128x128xbf16>, vector<8x128xf32> -> vector<8x128xf32>
    %123 = vector.broadcast %6 : vector<1x128xf32> to vector<8x128xf32>
    %124 = arith.addf %122, %123 : vector<8x128xf32>
    %125 = math.tanh %124 : vector<8x128xf32>
    %126 = arith.subf %108, %125 : vector<8x128xf32>
    %127 = vector.broadcast %120 : vector<8x1xf32> to vector<8x128xf32>
    %128 = arith.mulf %125, %127 : vector<8x128xf32>
    %129 = arith.addf %126, %128 : vector<8x128xf32>
    %130 = arith.truncf %110 : vector<8x128xf32> to vector<8x128xbf16>
    %131 = tpu.concatenate %130, %117 in 1 : vector<8x128xbf16>, vector<8x128xbf16> -> vector<8x256xbf16>
    %cst_41 = arith.constant dense<0.000000e+00> : vector<8x512xf32>
    %132 = tpu.matmul %131, %3, %cst_41 {dimension_numbers = #tpu.dot_dimension_numbers<[1], [0], [0], [1], [0, 0, 1, 1], [], []>} : vector<8x256xbf16>, vector<256x512xbf16>, vector<8x512xf32> -> vector<8x512xf32>
    %133 = vector.broadcast %4 : vector<1x512xf32> to vector<8x512xf32>
    %134 = arith.addf %132, %133 : vector<8x512xf32>
    %135 = vector.extract_strided_slice %134 {offsets = [0, 0], sizes = [8, 128], strides = [1, 1]} : vector<8x512xf32> to vector<8x128xf32>
    %136 = arith.negf %135 : vector<8x128xf32>
    %137 = math.exp %136 : vector<8x128xf32>
    %cst_42 = arith.constant 1.000000e+00 : f32
    %138 = vector.broadcast %cst_42 : f32 to vector<8x128xf32>
    %139 = arith.addf %138, %137 : vector<8x128xf32>
    %140 = arith.divf %138, %139 : vector<8x128xf32>
    %141 = vector.extract_strided_slice %134 {offsets = [0, 128], sizes = [8, 128], strides = [1, 1]} : vector<8x512xf32> to vector<8x128xf32>
    %142 = arith.negf %141 : vector<8x128xf32>
    %143 = math.exp %142 : vector<8x128xf32>
    %cst_43 = arith.constant 1.000000e+00 : f32
    %144 = vector.broadcast %cst_43 : f32 to vector<8x128xf32>
    %145 = arith.addf %144, %143 : vector<8x128xf32>
    %146 = arith.divf %144, %145 : vector<8x128xf32>
    %147 = vector.extract_strided_slice %134 {offsets = [0, 256], sizes = [8, 128], strides = [1, 1]} : vector<8x512xf32> to vector<8x128xf32>
    %148 = arith.negf %147 : vector<8x128xf32>
    %149 = math.exp %148 : vector<8x128xf32>
    %cst_44 = arith.constant 1.000000e+00 : f32
    %150 = vector.broadcast %cst_44 : f32 to vector<8x128xf32>
    %151 = arith.addf %150, %149 : vector<8x128xf32>
    %152 = arith.divf %150, %151 : vector<8x128xf32>
    %153 = vector.extract_strided_slice %134 {offsets = [0, 384], sizes = [8, 128], strides = [1, 1]} : vector<8x512xf32> to vector<8x128xf32>
    %154 = arith.negf %153 : vector<8x128xf32>
    %155 = math.exp %154 : vector<8x128xf32>
    %cst_45 = arith.constant 1.000000e+00 : f32
    %156 = vector.broadcast %cst_45 : f32 to vector<8x128xf32>
    %157 = arith.addf %156, %155 : vector<8x128xf32>
    %158 = arith.divf %156, %157 : vector<8x128xf32>
    %159 = arith.mulf %140, %129 : vector<8x128xf32>
    %160 = arith.mulf %146, %158 : vector<8x128xf32>
    %161 = arith.addf %159, %160 : vector<8x128xf32>
    %162 = math.tanh %161 : vector<8x128xf32>
    %163 = arith.mulf %152, %162 : vector<8x128xf32>
    %164 = arith.index_cast %c2_i32 : i32 to index
    %c0_46 = arith.constant 0 : index
    %c0_47 = arith.constant 0 : index
    %165 = vector.load %arg8[%164, %c0_46, %c0_47] : memref<8x8x128xf32, #tpu.memory_space<vmem>>, vector<1x8x128xf32>
    %166 = vector.shape_cast %165 : vector<1x8x128xf32> to vector<8x128xf32>
    %167 = vector.shape_cast %163 : vector<8x128xf32> to vector<1x8x128xf32>
    tpu.vector_store %arg8[%164, %c0_46, %c0_47], %167 {strides = array<i32>} : memref<8x8x128xf32, #tpu.memory_space<vmem>>, vector<1x8x128xf32>,
    %c3_i32 = arith.constant 3 : i32
    %168 = arith.index_cast %c3_i32 : i32 to index
    %c0_48 = arith.constant 0 : index
    %c0_49 = arith.constant 0 : index
    %169 = vector.load %arg2[%168, %c0_48, %c0_49] : memref<8x8x128xbf16, #tpu.memory_space<vmem>>, vector<1x8x128xbf16>
    %170 = vector.shape_cast %169 : vector<1x8x128xbf16> to vector<8x128xbf16>
    %171 = arith.index_cast %c3_i32 : i32 to index
    %c0_50 = arith.constant 0 : index
    %c0_51 = arith.constant 0 : index
    %172 = vector.load %arg3[%171, %c0_50, %c0_51] : memref<8x8x1xf32, #tpu.memory_space<vmem>>, vector<1x8x1xf32>
    %173 = vector.shape_cast %172 : vector<1x8x1xf32> to vector<8x1xf32>
    %174 = arith.truncf %161 : vector<8x128xf32> to vector<8x128xbf16>
    %cst_52 = arith.constant dense<0.000000e+00> : vector<8x128xf32>
    %175 = tpu.matmul %174, %5, %cst_52 {dimension_numbers = #tpu.dot_dimension_numbers<[1], [0], [0], [1], [0, 0, 1, 1], [], []>} : vector<8x128xbf16>, vector<128x128xbf16>, vector<8x128xf32> -> vector<8x128xf32>
    %176 = vector.broadcast %6 : vector<1x128xf32> to vector<8x128xf32>
    %177 = arith.addf %175, %176 : vector<8x128xf32>
    %178 = math.tanh %177 : vector<8x128xf32>
    %179 = arith.subf %161, %178 : vector<8x128xf32>
    %180 = vector.broadcast %173 : vector<8x1xf32> to vector<8x128xf32>
    %181 = arith.mulf %178, %180 : vector<8x128xf32>
    %182 = arith.addf %179, %181 : vector<8x128xf32>
    %183 = arith.truncf %163 : vector<8x128xf32> to vector<8x128xbf16>
    %184 = tpu.concatenate %183, %170 in 1 : vector<8x128xbf16>, vector<8x128xbf16> -> vector<8x256xbf16>
    %cst_53 = arith.constant dense<0.000000e+00> : vector<8x512xf32>
    %185 = tpu.matmul %184, %3, %cst_53 {dimension_numbers = #tpu.dot_dimension_numbers<[1], [0], [0], [1], [0, 0, 1, 1], [], []>} : vector<8x256xbf16>, vector<256x512xbf16>, vector<8x512xf32> -> vector<8x512xf32>
    %186 = vector.broadcast %4 : vector<1x512xf32> to vector<8x512xf32>
    %187 = arith.addf %185, %186 : vector<8x512xf32>
    %188 = vector.extract_strided_slice %187 {offsets = [0, 0], sizes = [8, 128], strides = [1, 1]} : vector<8x512xf32> to vector<8x128xf32>
    %189 = arith.negf %188 : vector<8x128xf32>
    %190 = math.exp %189 : vector<8x128xf32>
    %cst_54 = arith.constant 1.000000e+00 : f32
    %191 = vector.broadcast %cst_54 : f32 to vector<8x128xf32>
    %192 = arith.addf %191, %190 : vector<8x128xf32>
    %193 = arith.divf %191, %192 : vector<8x128xf32>
    %194 = vector.extract_strided_slice %187 {offsets = [0, 128], sizes = [8, 128], strides = [1, 1]} : vector<8x512xf32> to vector<8x128xf32>
    %195 = arith.negf %194 : vector<8x128xf32>
    %196 = math.exp %195 : vector<8x128xf32>
    %cst_55 = arith.constant 1.000000e+00 : f32
    %197 = vector.broadcast %cst_55 : f32 to vector<8x128xf32>
    %198 = arith.addf %197, %196 : vector<8x128xf32>
    %199 = arith.divf %197, %198 : vector<8x128xf32>
    %200 = vector.extract_strided_slice %187 {offsets = [0, 256], sizes = [8, 128], strides = [1, 1]} : vector<8x512xf32> to vector<8x128xf32>
    %201 = arith.negf %200 : vector<8x128xf32>
    %202 = math.exp %201 : vector<8x128xf32>
    %cst_56 = arith.constant 1.000000e+00 : f32
    %203 = vector.broadcast %cst_56 : f32 to vector<8x128xf32>
    %204 = arith.addf %203, %202 : vector<8x128xf32>
    %205 = arith.divf %203, %204 : vector<8x128xf32>
    %206 = vector.extract_strided_slice %187 {offsets = [0, 384], sizes = [8, 128], strides = [1, 1]} : vector<8x512xf32> to vector<8x128xf32>
    %207 = arith.negf %206 : vector<8x128xf32>
    %208 = math.exp %207 : vector<8x128xf32>
    %cst_57 = arith.constant 1.000000e+00 : f32
    %209 = vector.broadcast %cst_57 : f32 to vector<8x128xf32>
    %210 = arith.addf %209, %208 : vector<8x128xf32>
    %211 = arith.divf %209, %210 : vector<8x128xf32>
    %212 = arith.mulf %193, %182 : vector<8x128xf32>
    %213 = arith.mulf %199, %211 : vector<8x128xf32>
    %214 = arith.addf %212, %213 : vector<8x128xf32>
    %215 = math.tanh %214 : vector<8x128xf32>
    %216 = arith.mulf %205, %215 : vector<8x128xf32>
    %217 = arith.index_cast %c3_i32 : i32 to index
    %c0_58 = arith.constant 0 : index
    %c0_59 = arith.constant 0 : index
    %218 = vector.load %arg8[%217, %c0_58, %c0_59] : memref<8x8x128xf32, #tpu.memory_space<vmem>>, vector<1x8x128xf32>
    %219 = vector.shape_cast %218 : vector<1x8x128xf32> to vector<8x128xf32>
    %220 = vector.shape_cast %216 : vector<8x128xf32> to vector<1x8x128xf32>
    tpu.vector_store %arg8[%217, %c0_58, %c0_59], %220 {strides = array<i32>} : memref<8x8x128xf32, #tpu.memory_space<vmem>>, vector<1x8x128xf32>,
    %c4_i32 = arith.constant 4 : i32
    %221 = arith.index_cast %c4_i32 : i32 to index
    %c0_60 = arith.constant 0 : index
    %c0_61 = arith.constant 0 : index
    %222 = vector.load %arg2[%221, %c0_60, %c0_61] : memref<8x8x128xbf16, #tpu.memory_space<vmem>>, vector<1x8x128xbf16>
    %223 = vector.shape_cast %222 : vector<1x8x128xbf16> to vector<8x128xbf16>
    %224 = arith.index_cast %c4_i32 : i32 to index
    %c0_62 = arith.constant 0 : index
    %c0_63 = arith.constant 0 : index
    %225 = vector.load %arg3[%224, %c0_62, %c0_63] : memref<8x8x1xf32, #tpu.memory_space<vmem>>, vector<1x8x1xf32>
    %226 = vector.shape_cast %225 : vector<1x8x1xf32> to vector<8x1xf32>
    %227 = arith.truncf %214 : vector<8x128xf32> to vector<8x128xbf16>
    %cst_64 = arith.constant dense<0.000000e+00> : vector<8x128xf32>
    %228 = tpu.matmul %227, %5, %cst_64 {dimension_numbers = #tpu.dot_dimension_numbers<[1], [0], [0], [1], [0, 0, 1, 1], [], []>} : vector<8x128xbf16>, vector<128x128xbf16>, vector<8x128xf32> -> vector<8x128xf32>
    %229 = vector.broadcast %6 : vector<1x128xf32> to vector<8x128xf32>
    %230 = arith.addf %228, %229 : vector<8x128xf32>
    %231 = math.tanh %230 : vector<8x128xf32>
    %232 = arith.subf %214, %231 : vector<8x128xf32>
    %233 = vector.broadcast %226 : vector<8x1xf32> to vector<8x128xf32>
    %234 = arith.mulf %231, %233 : vector<8x128xf32>
    %235 = arith.addf %232, %234 : vector<8x128xf32>
    %236 = arith.truncf %216 : vector<8x128xf32> to vector<8x128xbf16>
    %237 = tpu.concatenate %236, %223 in 1 : vector<8x128xbf16>, vector<8x128xbf16> -> vector<8x256xbf16>
    %cst_65 = arith.constant dense<0.000000e+00> : vector<8x512xf32>
    %238 = tpu.matmul %237, %3, %cst_65 {dimension_numbers = #tpu.dot_dimension_numbers<[1], [0], [0], [1], [0, 0, 1, 1], [], []>} : vector<8x256xbf16>, vector<256x512xbf16>, vector<8x512xf32> -> vector<8x512xf32>
    %239 = vector.broadcast %4 : vector<1x512xf32> to vector<8x512xf32>
    %240 = arith.addf %238, %239 : vector<8x512xf32>
    %241 = vector.extract_strided_slice %240 {offsets = [0, 0], sizes = [8, 128], strides = [1, 1]} : vector<8x512xf32> to vector<8x128xf32>
    %242 = arith.negf %241 : vector<8x128xf32>
    %243 = math.exp %242 : vector<8x128xf32>
    %cst_66 = arith.constant 1.000000e+00 : f32
    %244 = vector.broadcast %cst_66 : f32 to vector<8x128xf32>
    %245 = arith.addf %244, %243 : vector<8x128xf32>
    %246 = arith.divf %244, %245 : vector<8x128xf32>
    %247 = vector.extract_strided_slice %240 {offsets = [0, 128], sizes = [8, 128], strides = [1, 1]} : vector<8x512xf32> to vector<8x128xf32>
    %248 = arith.negf %247 : vector<8x128xf32>
    %249 = math.exp %248 : vector<8x128xf32>
    %cst_67 = arith.constant 1.000000e+00 : f32
    %250 = vector.broadcast %cst_67 : f32 to vector<8x128xf32>
    %251 = arith.addf %250, %249 : vector<8x128xf32>
    %252 = arith.divf %250, %251 : vector<8x128xf32>
    %253 = vector.extract_strided_slice %240 {offsets = [0, 256], sizes = [8, 128], strides = [1, 1]} : vector<8x512xf32> to vector<8x128xf32>
    %254 = arith.negf %253 : vector<8x128xf32>
    %255 = math.exp %254 : vector<8x128xf32>
    %cst_68 = arith.constant 1.000000e+00 : f32
    %256 = vector.broadcast %cst_68 : f32 to vector<8x128xf32>
    %257 = arith.addf %256, %255 : vector<8x128xf32>
    %258 = arith.divf %256, %257 : vector<8x128xf32>
    %259 = vector.extract_strided_slice %240 {offsets = [0, 384], sizes = [8, 128], strides = [1, 1]} : vector<8x512xf32> to vector<8x128xf32>
    %260 = arith.negf %259 : vector<8x128xf32>
    %261 = math.exp %260 : vector<8x128xf32>
    %cst_69 = arith.constant 1.000000e+00 : f32
    %262 = vector.broadcast %cst_69 : f32 to vector<8x128xf32>
    %263 = arith.addf %262, %261 : vector<8x128xf32>
    %264 = arith.divf %262, %263 : vector<8x128xf32>
    %265 = arith.mulf %246, %235 : vector<8x128xf32>
    %266 = arith.mulf %252, %264 : vector<8x128xf32>
    %267 = arith.addf %265, %266 : vector<8x128xf32>
    %268 = math.tanh %267 : vector<8x128xf32>
    %269 = arith.mulf %258, %268 : vector<8x128xf32>
    %270 = arith.index_cast %c4_i32 : i32 to index
    %c0_70 = arith.constant 0 : index
    %c0_71 = arith.constant 0 : index
    %271 = vector.load %arg8[%270, %c0_70, %c0_71] : memref<8x8x128xf32, #tpu.memory_space<vmem>>, vector<1x8x128xf32>
    %272 = vector.shape_cast %271 : vector<1x8x128xf32> to vector<8x128xf32>
    %273 = vector.shape_cast %269 : vector<8x128xf32> to vector<1x8x128xf32>
    tpu.vector_store %arg8[%270, %c0_70, %c0_71], %273 {strides = array<i32>} : memref<8x8x128xf32, #tpu.memory_space<vmem>>, vector<1x8x128xf32>,
    %c5_i32 = arith.constant 5 : i32
    %274 = arith.index_cast %c5_i32 : i32 to index
    %c0_72 = arith.constant 0 : index
    %c0_73 = arith.constant 0 : index
    %275 = vector.load %arg2[%274, %c0_72, %c0_73] : memref<8x8x128xbf16, #tpu.memory_space<vmem>>, vector<1x8x128xbf16>
    %276 = vector.shape_cast %275 : vector<1x8x128xbf16> to vector<8x128xbf16>
    %277 = arith.index_cast %c5_i32 : i32 to index
    %c0_74 = arith.constant 0 : index
    %c0_75 = arith.constant 0 : index
    %278 = vector.load %arg3[%277, %c0_74, %c0_75] : memref<8x8x1xf32, #tpu.memory_space<vmem>>, vector<1x8x1xf32>
    %279 = vector.shape_cast %278 : vector<1x8x1xf32> to vector<8x1xf32>
    %280 = arith.truncf %267 : vector<8x128xf32> to vector<8x128xbf16>
    %cst_76 = arith.constant dense<0.000000e+00> : vector<8x128xf32>
    %281 = tpu.matmul %280, %5, %cst_76 {dimension_numbers = #tpu.dot_dimension_numbers<[1], [0], [0], [1], [0, 0, 1, 1], [], []>} : vector<8x128xbf16>, vector<128x128xbf16>, vector<8x128xf32> -> vector<8x128xf32>
    %282 = vector.broadcast %6 : vector<1x128xf32> to vector<8x128xf32>
    %283 = arith.addf %281, %282 : vector<8x128xf32>
    %284 = math.tanh %283 : vector<8x128xf32>
    %285 = arith.subf %267, %284 : vector<8x128xf32>
    %286 = vector.broadcast %279 : vector<8x1xf32> to vector<8x128xf32>
    %287 = arith.mulf %284, %286 : vector<8x128xf32>
    %288 = arith.addf %285, %287 : vector<8x128xf32>
    %289 = arith.truncf %269 : vector<8x128xf32> to vector<8x128xbf16>
    %290 = tpu.concatenate %289, %276 in 1 : vector<8x128xbf16>, vector<8x128xbf16> -> vector<8x256xbf16>
    %cst_77 = arith.constant dense<0.000000e+00> : vector<8x512xf32>
    %291 = tpu.matmul %290, %3, %cst_77 {dimension_numbers = #tpu.dot_dimension_numbers<[1], [0], [0], [1], [0, 0, 1, 1], [], []>} : vector<8x256xbf16>, vector<256x512xbf16>, vector<8x512xf32> -> vector<8x512xf32>
    %292 = vector.broadcast %4 : vector<1x512xf32> to vector<8x512xf32>
    %293 = arith.addf %291, %292 : vector<8x512xf32>
    %294 = vector.extract_strided_slice %293 {offsets = [0, 0], sizes = [8, 128], strides = [1, 1]} : vector<8x512xf32> to vector<8x128xf32>
    %295 = arith.negf %294 : vector<8x128xf32>
    %296 = math.exp %295 : vector<8x128xf32>
    %cst_78 = arith.constant 1.000000e+00 : f32
    %297 = vector.broadcast %cst_78 : f32 to vector<8x128xf32>
    %298 = arith.addf %297, %296 : vector<8x128xf32>
    %299 = arith.divf %297, %298 : vector<8x128xf32>
    %300 = vector.extract_strided_slice %293 {offsets = [0, 128], sizes = [8, 128], strides = [1, 1]} : vector<8x512xf32> to vector<8x128xf32>
    %301 = arith.negf %300 : vector<8x128xf32>
    %302 = math.exp %301 : vector<8x128xf32>
    %cst_79 = arith.constant 1.000000e+00 : f32
    %303 = vector.broadcast %cst_79 : f32 to vector<8x128xf32>
    %304 = arith.addf %303, %302 : vector<8x128xf32>
    %305 = arith.divf %303, %304 : vector<8x128xf32>
    %306 = vector.extract_strided_slice %293 {offsets = [0, 256], sizes = [8, 128], strides = [1, 1]} : vector<8x512xf32> to vector<8x128xf32>
    %307 = arith.negf %306 : vector<8x128xf32>
    %308 = math.exp %307 : vector<8x128xf32>
    %cst_80 = arith.constant 1.000000e+00 : f32
    %309 = vector.broadcast %cst_80 : f32 to vector<8x128xf32>
    %310 = arith.addf %309, %308 : vector<8x128xf32>
    %311 = arith.divf %309, %310 : vector<8x128xf32>
    %312 = vector.extract_strided_slice %293 {offsets = [0, 384], sizes = [8, 128], strides = [1, 1]} : vector<8x512xf32> to vector<8x128xf32>
    %313 = arith.negf %312 : vector<8x128xf32>
    %314 = math.exp %313 : vector<8x128xf32>
    %cst_81 = arith.constant 1.000000e+00 : f32
    %315 = vector.broadcast %cst_81 : f32 to vector<8x128xf32>
    %316 = arith.addf %315, %314 : vector<8x128xf32>
    %317 = arith.divf %315, %316 : vector<8x128xf32>
    %318 = arith.mulf %299, %288 : vector<8x128xf32>
    %319 = arith.mulf %305, %317 : vector<8x128xf32>
    %320 = arith.addf %318, %319 : vector<8x128xf32>
    %321 = math.tanh %320 : vector<8x128xf32>
    %322 = arith.mulf %311, %321 : vector<8x128xf32>
    %323 = arith.index_cast %c5_i32 : i32 to index
    %c0_82 = arith.constant 0 : index
    %c0_83 = arith.constant 0 : index
    %324 = vector.load %arg8[%323, %c0_82, %c0_83] : memref<8x8x128xf32, #tpu.memory_space<vmem>>, vector<1x8x128xf32>
    %325 = vector.shape_cast %324 : vector<1x8x128xf32> to vector<8x128xf32>
    %326 = vector.shape_cast %322 : vector<8x128xf32> to vector<1x8x128xf32>
    tpu.vector_store %arg8[%323, %c0_82, %c0_83], %326 {strides = array<i32>} : memref<8x8x128xf32, #tpu.memory_space<vmem>>, vector<1x8x128xf32>,
    %c6_i32 = arith.constant 6 : i32
    %327 = arith.index_cast %c6_i32 : i32 to index
    %c0_84 = arith.constant 0 : index
    %c0_85 = arith.constant 0 : index
    %328 = vector.load %arg2[%327, %c0_84, %c0_85] : memref<8x8x128xbf16, #tpu.memory_space<vmem>>, vector<1x8x128xbf16>
    %329 = vector.shape_cast %328 : vector<1x8x128xbf16> to vector<8x128xbf16>
    %330 = arith.index_cast %c6_i32 : i32 to index
    %c0_86 = arith.constant 0 : index
    %c0_87 = arith.constant 0 : index
    %331 = vector.load %arg3[%330, %c0_86, %c0_87] : memref<8x8x1xf32, #tpu.memory_space<vmem>>, vector<1x8x1xf32>
    %332 = vector.shape_cast %331 : vector<1x8x1xf32> to vector<8x1xf32>
    %333 = arith.truncf %320 : vector<8x128xf32> to vector<8x128xbf16>
    %cst_88 = arith.constant dense<0.000000e+00> : vector<8x128xf32>
    %334 = tpu.matmul %333, %5, %cst_88 {dimension_numbers = #tpu.dot_dimension_numbers<[1], [0], [0], [1], [0, 0, 1, 1], [], []>} : vector<8x128xbf16>, vector<128x128xbf16>, vector<8x128xf32> -> vector<8x128xf32>
    %335 = vector.broadcast %6 : vector<1x128xf32> to vector<8x128xf32>
    %336 = arith.addf %334, %335 : vector<8x128xf32>
    %337 = math.tanh %336 : vector<8x128xf32>
    %338 = arith.subf %320, %337 : vector<8x128xf32>
    %339 = vector.broadcast %332 : vector<8x1xf32> to vector<8x128xf32>
    %340 = arith.mulf %337, %339 : vector<8x128xf32>
    %341 = arith.addf %338, %340 : vector<8x128xf32>
    %342 = arith.truncf %322 : vector<8x128xf32> to vector<8x128xbf16>
    %343 = tpu.concatenate %342, %329 in 1 : vector<8x128xbf16>, vector<8x128xbf16> -> vector<8x256xbf16>
    %cst_89 = arith.constant dense<0.000000e+00> : vector<8x512xf32>
    %344 = tpu.matmul %343, %3, %cst_89 {dimension_numbers = #tpu.dot_dimension_numbers<[1], [0], [0], [1], [0, 0, 1, 1], [], []>} : vector<8x256xbf16>, vector<256x512xbf16>, vector<8x512xf32> -> vector<8x512xf32>
    %345 = vector.broadcast %4 : vector<1x512xf32> to vector<8x512xf32>
    %346 = arith.addf %344, %345 : vector<8x512xf32>
    %347 = vector.extract_strided_slice %346 {offsets = [0, 0], sizes = [8, 128], strides = [1, 1]} : vector<8x512xf32> to vector<8x128xf32>
    %348 = arith.negf %347 : vector<8x128xf32>
    %349 = math.exp %348 : vector<8x128xf32>
    %cst_90 = arith.constant 1.000000e+00 : f32
    %350 = vector.broadcast %cst_90 : f32 to vector<8x128xf32>
    %351 = arith.addf %350, %349 : vector<8x128xf32>
    %352 = arith.divf %350, %351 : vector<8x128xf32>
    %353 = vector.extract_strided_slice %346 {offsets = [0, 128], sizes = [8, 128], strides = [1, 1]} : vector<8x512xf32> to vector<8x128xf32>
    %354 = arith.negf %353 : vector<8x128xf32>
    %355 = math.exp %354 : vector<8x128xf32>
    %cst_91 = arith.constant 1.000000e+00 : f32
    %356 = vector.broadcast %cst_91 : f32 to vector<8x128xf32>
    %357 = arith.addf %356, %355 : vector<8x128xf32>
    %358 = arith.divf %356, %357 : vector<8x128xf32>
    %359 = vector.extract_strided_slice %346 {offsets = [0, 256], sizes = [8, 128], strides = [1, 1]} : vector<8x512xf32> to vector<8x128xf32>
    %360 = arith.negf %359 : vector<8x128xf32>
    %361 = math.exp %360 : vector<8x128xf32>
    %cst_92 = arith.constant 1.000000e+00 : f32
    %362 = vector.broadcast %cst_92 : f32 to vector<8x128xf32>
    %363 = arith.addf %362, %361 : vector<8x128xf32>
    %364 = arith.divf %362, %363 : vector<8x128xf32>
    %365 = vector.extract_strided_slice %346 {offsets = [0, 384], sizes = [8, 128], strides = [1, 1]} : vector<8x512xf32> to vector<8x128xf32>
    %366 = arith.negf %365 : vector<8x128xf32>
    %367 = math.exp %366 : vector<8x128xf32>
    %cst_93 = arith.constant 1.000000e+00 : f32
    %368 = vector.broadcast %cst_93 : f32 to vector<8x128xf32>
    %369 = arith.addf %368, %367 : vector<8x128xf32>
    %370 = arith.divf %368, %369 : vector<8x128xf32>
    %371 = arith.mulf %352, %341 : vector<8x128xf32>
    %372 = arith.mulf %358, %370 : vector<8x128xf32>
    %373 = arith.addf %371, %372 : vector<8x128xf32>
    %374 = math.tanh %373 : vector<8x128xf32>
    %375 = arith.mulf %364, %374 : vector<8x128xf32>
    %376 = arith.index_cast %c6_i32 : i32 to index
    %c0_94 = arith.constant 0 : index
    %c0_95 = arith.constant 0 : index
    %377 = vector.load %arg8[%376, %c0_94, %c0_95] : memref<8x8x128xf32, #tpu.memory_space<vmem>>, vector<1x8x128xf32>
    %378 = vector.shape_cast %377 : vector<1x8x128xf32> to vector<8x128xf32>
    %379 = vector.shape_cast %375 : vector<8x128xf32> to vector<1x8x128xf32>
    tpu.vector_store %arg8[%376, %c0_94, %c0_95], %379 {strides = array<i32>} : memref<8x8x128xf32, #tpu.memory_space<vmem>>, vector<1x8x128xf32>,
    %c7_i32 = arith.constant 7 : i32
    %380 = arith.index_cast %c7_i32 : i32 to index
    %c0_96 = arith.constant 0 : index
    %c0_97 = arith.constant 0 : index
    %381 = vector.load %arg2[%380, %c0_96, %c0_97] : memref<8x8x128xbf16, #tpu.memory_space<vmem>>, vector<1x8x128xbf16>
    %382 = vector.shape_cast %381 : vector<1x8x128xbf16> to vector<8x128xbf16>
    %383 = arith.index_cast %c7_i32 : i32 to index
    %c0_98 = arith.constant 0 : index
    %c0_99 = arith.constant 0 : index
    %384 = vector.load %arg3[%383, %c0_98, %c0_99] : memref<8x8x1xf32, #tpu.memory_space<vmem>>, vector<1x8x1xf32>
    %385 = vector.shape_cast %384 : vector<1x8x1xf32> to vector<8x1xf32>
    %386 = arith.truncf %373 : vector<8x128xf32> to vector<8x128xbf16>
    %cst_100 = arith.constant dense<0.000000e+00> : vector<8x128xf32>
    %387 = tpu.matmul %386, %5, %cst_100 {dimension_numbers = #tpu.dot_dimension_numbers<[1], [0], [0], [1], [0, 0, 1, 1], [], []>} : vector<8x128xbf16>, vector<128x128xbf16>, vector<8x128xf32> -> vector<8x128xf32>
    %388 = vector.broadcast %6 : vector<1x128xf32> to vector<8x128xf32>
    %389 = arith.addf %387, %388 : vector<8x128xf32>
    %390 = math.tanh %389 : vector<8x128xf32>
    %391 = arith.subf %373, %390 : vector<8x128xf32>
    %392 = vector.broadcast %385 : vector<8x1xf32> to vector<8x128xf32>
    %393 = arith.mulf %390, %392 : vector<8x128xf32>
    %394 = arith.addf %391, %393 : vector<8x128xf32>
    %395 = arith.truncf %375 : vector<8x128xf32> to vector<8x128xbf16>
    %396 = tpu.concatenate %395, %382 in 1 : vector<8x128xbf16>, vector<8x128xbf16> -> vector<8x256xbf16>
    %cst_101 = arith.constant dense<0.000000e+00> : vector<8x512xf32>
    %397 = tpu.matmul %396, %3, %cst_101 {dimension_numbers = #tpu.dot_dimension_numbers<[1], [0], [0], [1], [0, 0, 1, 1], [], []>} : vector<8x256xbf16>, vector<256x512xbf16>, vector<8x512xf32> -> vector<8x512xf32>
    %398 = vector.broadcast %4 : vector<1x512xf32> to vector<8x512xf32>
    %399 = arith.addf %397, %398 : vector<8x512xf32>
    %400 = vector.extract_strided_slice %399 {offsets = [0, 0], sizes = [8, 128], strides = [1, 1]} : vector<8x512xf32> to vector<8x128xf32>
    %401 = arith.negf %400 : vector<8x128xf32>
    %402 = math.exp %401 : vector<8x128xf32>
    %cst_102 = arith.constant 1.000000e+00 : f32
    %403 = vector.broadcast %cst_102 : f32 to vector<8x128xf32>
    %404 = arith.addf %403, %402 : vector<8x128xf32>
    %405 = arith.divf %403, %404 : vector<8x128xf32>
    %406 = vector.extract_strided_slice %399 {offsets = [0, 128], sizes = [8, 128], strides = [1, 1]} : vector<8x512xf32> to vector<8x128xf32>
    %407 = arith.negf %406 : vector<8x128xf32>
    %408 = math.exp %407 : vector<8x128xf32>
    %cst_103 = arith.constant 1.000000e+00 : f32
    %409 = vector.broadcast %cst_103 : f32 to vector<8x128xf32>
    %410 = arith.addf %409, %408 : vector<8x128xf32>
    %411 = arith.divf %409, %410 : vector<8x128xf32>
    %412 = vector.extract_strided_slice %399 {offsets = [0, 256], sizes = [8, 128], strides = [1, 1]} : vector<8x512xf32> to vector<8x128xf32>
    %413 = arith.negf %412 : vector<8x128xf32>
    %414 = math.exp %413 : vector<8x128xf32>
    %cst_104 = arith.constant 1.000000e+00 : f32
    %415 = vector.broadcast %cst_104 : f32 to vector<8x128xf32>
    %416 = arith.addf %415, %414 : vector<8x128xf32>
    %417 = arith.divf %415, %416 : vector<8x128xf32>
    %418 = vector.extract_strided_slice %399 {offsets = [0, 384], sizes = [8, 128], strides = [1, 1]} : vector<8x512xf32> to vector<8x128xf32>
    %419 = arith.negf %418 : vector<8x128xf32>
    %420 = math.exp %419 : vector<8x128xf32>
    %cst_105 = arith.constant 1.000000e+00 : f32
    %421 = vector.broadcast %cst_105 : f32 to vector<8x128xf32>
    %422 = arith.addf %421, %420 : vector<8x128xf32>
    %423 = arith.divf %421, %422 : vector<8x128xf32>
    %424 = arith.mulf %405, %394 : vector<8x128xf32>
    %425 = arith.mulf %411, %423 : vector<8x128xf32>
    %426 = arith.addf %424, %425 : vector<8x128xf32>
    %427 = math.tanh %426 : vector<8x128xf32>
    %428 = arith.mulf %417, %427 : vector<8x128xf32>
    %429 = arith.index_cast %c7_i32 : i32 to index
    %c0_106 = arith.constant 0 : index
    %c0_107 = arith.constant 0 : index
    %430 = vector.load %arg8[%429, %c0_106, %c0_107] : memref<8x8x128xf32, #tpu.memory_space<vmem>>, vector<1x8x128xf32>
    %431 = vector.shape_cast %430 : vector<1x8x128xf32> to vector<8x128xf32>
    %432 = vector.shape_cast %428 : vector<8x128xf32> to vector<1x8x128xf32>
    tpu.vector_store %arg8[%429, %c0_106, %c0_107], %432 {strides = array<i32>} : memref<8x8x128xf32, #tpu.memory_space<vmem>>, vector<1x8x128xf32>,
    %c8_i32 = arith.constant 8 : i32
    %c0_108 = arith.constant 0 : index
    %c0_109 = arith.constant 0 : index
    %433 = vector.load %arg9[%c0_108, %c0_109] : memref<8x128xf32, #tpu.memory_space<vmem>>, vector<8x128xf32>
    tpu.vector_store %arg9[%c0_108, %c0_109], %428 {strides = array<i32>} : memref<8x128xf32, #tpu.memory_space<vmem>>, vector<8x128xf32>,
    %c0_110 = arith.constant 0 : index
    %c0_111 = arith.constant 0 : index
    %434 = vector.load %arg10[%c0_110, %c0_111] : memref<8x128xf32, #tpu.memory_space<vmem>>, vector<8x128xf32>
    tpu.vector_store %arg10[%c0_110, %c0_111], %426 {strides = array<i32>} : memref<8x128xf32, #tpu.memory_space<vmem>>, vector<8x128xf32>,
    return
  }
  func.func @transform_0(%arg0: i32, %arg1: i32) -> (i32, i32, i32) {
    %c0_i32 = arith.constant 0 : i32
    %c0_i32_0 = arith.constant 0 : i32
    return %arg1, %arg0, %c0_i32 : i32, i32, i32
  }
  func.func @transform_1(%arg0: i32, %arg1: i32) -> (i32, i32, i32) {
    %c0_i32 = arith.constant 0 : i32
    %c0_i32_0 = arith.constant 0 : i32
    return %arg1, %arg0, %c0_i32 : i32, i32, i32
  }
  func.func @transform_2(%arg0: i32, %arg1: i32) -> (i32, i32) {
    %c0_i32 = arith.constant 0 : i32
    %c0_i32_0 = arith.constant 0 : i32
    %c0_i32_1 = arith.constant 0 : i32
    return %c0_i32, %c0_i32_0 : i32, i32
  }
  func.func @transform_3(%arg0: i32, %arg1: i32) -> (i32, i32) {
    %c0_i32 = arith.constant 0 : i32
    %c0_i32_0 = arith.constant 0 : i32
    %c0_i32_1 = arith.constant 0 : i32
    return %c0_i32, %c0_i32_0 : i32, i32
  }
  func.func @transform_4(%arg0: i32, %arg1: i32) -> (i32, i32) {
    %c0_i32 = arith.constant 0 : i32
    %c0_i32_0 = arith.constant 0 : i32
    %c0_i32_1 = arith.constant 0 : i32
    return %c0_i32, %c0_i32_0 : i32, i32
  }
  func.func @transform_5(%arg0: i32, %arg1: i32) -> (i32, i32) {
    %c0_i32 = arith.constant 0 : i32
    %c0_i32_0 = arith.constant 0 : i32
    %c0_i32_1 = arith.constant 0 : i32
    return %c0_i32, %c0_i32_0 : i32, i32
  }
  func.func @transform_6(%arg0: i32, %arg1: i32) -> (i32, i32, i32) {
    %c0_i32 = arith.constant 0 : i32
    %c0_i32_0 = arith.constant 0 : i32
    return %arg1, %arg0, %c0_i32 : i32, i32, i32
  }
}

</mosaic_0001>

<llo_original>
// kernel: tpu_custom_call.1
$region0: #{tpu_custom_call.1}
  #allocation0 [shape = 'u32[]', space=smem, size = 0x4, offset = 0x4, fixed_abs, tag = 'smem constant byte address 0x4 - core index']
  #allocation1 [shape = 'u32[144,128]{1,0:T(1,128)}', space=vmem, size = 0x12000, scoped, tag = 'internal scratch']
  #allocation2 [shape = 'f32[8,128]{1,0:T(8,128)}', space=vmem, size = 0x1000, scoped, tag = 'scratch operand']
  #allocation3 [shape = 'f32[8,128]{1,0:T(8,128)}', space=vmem, size = 0x1000, scoped, tag = 'scratch operand']
  %s0 = inlined_call_operand.hbm [shape: bf16[8,8,128], index: 0, kind: input, shape index: {}]
  %s1 = inlined_call_operand.vmem [shape: f32[8,8,1], index: 1, kind: input, shape index: {}]
  %s2 = inlined_call_operand.hbm [shape: bf16[256,512], index: 2, kind: input, shape index: {}]
  %s3 = inlined_call_operand.vmem [shape: f32[1,512], index: 3, kind: input, shape index: {}]
  %s4 = inlined_call_operand.vmem [shape: bf16[128,128], index: 4, kind: input, shape index: {}]
  %s5 = inlined_call_operand.vmem [shape: f32[1,128], index: 5, kind: input, shape index: {}]
  %s6 = inlined_call_operand.hbm [shape: f32[8,8,128], index: 6, kind: output, shape index: {}]
  %s7 = sld [smem:[#allocation0]]
  $region46: #{tpu_custom_call.1} parent=0
    _
  %s9 = ssub.s32 1, %s7
  %s10 = scalar_select 0, %s9, %s7
  $region1: #{tpu_custom_call.1} parent=0
    #allocation4 [shape = 'u8[16384]{0}', space=vmem, size = 0x4000, scoped, tag = 'input window, operand 0, single buffered']
    #allocation5 [shape = 's32[1]{0}', space=sflag, size = 0x4, scoped, tag = 'scoped memory for tpu_custom_call.1']
    #allocation6 [shape = 's32[1]{0}', space=sflag, size = 0x4, scoped, tag = 'scoped memory for tpu_custom_call.1']
    #allocation7 [shape = 'u8[262144]{0}', space=vmem, size = 0x40000, scoped, tag = 'input window, operand 2, single buffered']
    #allocation8 [shape = 's32[1]{0}', space=sflag, size = 0x4, scoped, tag = 'scoped memory for tpu_custom_call.1']
    #allocation9 [shape = 'u8[32768]{0}', space=vmem, size = 0x8000, scoped, tag = 'output window, operand 0, single buffered']
    %11 = vsyncpa [#allocation5], 0
    %12 = vsyncpa [#allocation8], 0
    %13 = vsyncpa [#allocation6], 0
    // Predicated region
    $region2: #{tpu_custom_call.1} parent=1 // pred_check
      _
    $region3: #{tpu_custom_call.1} parent=1 // pred_check_branch
      %15 = sbr.rel (0) target = $region5
    $region4: #{tpu_custom_call.1} parent=1 // pred_region
      %s17 = ssub.s32 512, 512
      %18 = vsyncadd [#allocation5], %s17
      %s19 = sshll.u32 [#allocation4], 4
      %s20 = int_to_ptr.vmem [resolvable:$true] %s19
      %25 = dma.hbm_to_vmem [thread:$0]  %s0, 512, %s20, [#allocation5], 64, 64, 4
    $region5: #{tpu_custom_call.1} parent=1 // pred_fallthru
      _
    // Predicated region
    $region6: #{tpu_custom_call.1} parent=1 // pred_check
      _
    $region7: #{tpu_custom_call.1} parent=1 // pred_check_branch
      %27 = sbr.rel (0) target = $region9
    $region8: #{tpu_custom_call.1} parent=1 // pred_region
      _
    $region9: #{tpu_custom_call.1} parent=1 // pred_fallthru
      _
    // Predicated region
    $region10: #{tpu_custom_call.1} parent=1 // pred_check
      _
    $region11: #{tpu_custom_call.1} parent=1 // pred_check_branch
      %29 = sbr.rel (0) target = $region13
    $region12: #{tpu_custom_call.1} parent=1 // pred_region
      %s31 = ssub.s32 8192, 8192
      %32 = vsyncadd [#allocation8], %s31
      %s33 = sshll.u32 [#allocation7], 4
      %s34 = int_to_ptr.vmem [resolvable:$true] %s33
      %39 = dma.hbm_to_vmem [thread:$0]  %s2, 8192, %s34, [#allocation8], 256, 256, 16
    $region13: #{tpu_custom_call.1} parent=1 // pred_fallthru
      _
    // Predicated region
    $region14: #{tpu_custom_call.1} parent=1 // pred_check
      _
    $region15: #{tpu_custom_call.1} parent=1 // pred_check_branch
      %41 = sbr.rel (0) target = $region17
    $region16: #{tpu_custom_call.1} parent=1 // pred_region
      _
    $region17: #{tpu_custom_call.1} parent=1 // pred_fallthru
      _
    // Predicated region
    $region18: #{tpu_custom_call.1} parent=1 // pred_check
      _
    $region19: #{tpu_custom_call.1} parent=1 // pred_check_branch
      %43 = sbr.rel (0) target = $region21
    $region20: #{tpu_custom_call.1} parent=1 // pred_region
      _
    $region21: #{tpu_custom_call.1} parent=1 // pred_fallthru
      _
    // Predicated region
    $region22: #{tpu_custom_call.1} parent=1 // pred_check
      _
    $region23: #{tpu_custom_call.1} parent=1 // pred_check_branch
      %45 = sbr.rel (0) target = $region25
    $region24: #{tpu_custom_call.1} parent=1 // pred_region
      _
    $region25: #{tpu_custom_call.1} parent=1 // pred_fallthru
      _
    // Predicated region
    $region26: #{tpu_custom_call.1} parent=1 // pred_check
      _
    $region27: #{tpu_custom_call.1} parent=1 // pred_check_branch
      %47 = sbr.rel (0) target = $region29
    $region28: #{tpu_custom_call.1} parent=1 // pred_region
      %48 = dma.done [#allocation5], 512
    $region29: #{tpu_custom_call.1} parent=1 // pred_fallthru
      _
    // Predicated region
    $region30: #{tpu_custom_call.1} parent=1 // pred_check
      _
    $region31: #{tpu_custom_call.1} parent=1 // pred_check_branch
      %50 = sbr.rel (0) target = $region33
    $region32: #{tpu_custom_call.1} parent=1 // pred_region
      %51 = dma.done [#allocation8], 8192
    $region33: #{tpu_custom_call.1} parent=1 // pred_fallthru
      _
    %p53 = scmp.eq.s32.totalorder 0, 0
    // Predicated region
    $region34: #{tpu_custom_call.1} parent=1 // pred_check
      %p54 = pneg %p53
    $region35: #{tpu_custom_call.1} parent=1 // pred_check_branch
      %56 = sbr.rel (%p54) target = $region37
    $region36: #{tpu_custom_call.1} parent=1 // pred_region
      %57 = vst [vmem:[#allocation2] sm:$0xff] 0.0
      %58 = vst [vmem:[#allocation3] sm:$0xff] 0.0
    $region37: #{tpu_custom_call.1} parent=1 // pred_fallthru
      _
    %v59 = vld [vmem:[#allocation7] sm:$0xff]
    %v60 = vld [vmem:[#allocation7 + $0x8] sm:$0xff]
    %v61 = vld [vmem:[#allocation7 + $0x10] sm:$0xff]
    %v62 = vld [vmem:[#allocation7 + $0x18] sm:$0xff]
    %v63 = vld [vmem:[#allocation7 + $0x20] sm:$0xff]
    %v64 = vld [vmem:[#allocation7 + $0x28] sm:$0xff]
    %v65 = vld [vmem:[#allocation7 + $0x30] sm:$0xff]
    %v66 = vld [vmem:[#allocation7 + $0x38] sm:$0xff]
    %v67 = vld [vmem:[#allocation7 + $0x40] sm:$0xff]
    %v68 = vld [vmem:[#allocation7 + $0x48] sm:$0xff]
    %v69 = vld [vmem:[#allocation7 + $0x50] sm:$0xff]
    %v70 = vld [vmem:[#allocation7 + $0x58] sm:$0xff]
    %v71 = vld [vmem:[#allocation7 + $0x60] sm:$0xff]
    %v72 = vld [vmem:[#allocation7 + $0x68] sm:$0xff]
    %v73 = vld [vmem:[#allocation7 + $0x70] sm:$0xff]
    %v74 = vld [vmem:[#allocation7 + $0x78] sm:$0xff]
    %v75 = vld [vmem:[#allocation7 + $0x80] sm:$0xff]
    %v76 = vld [vmem:[#allocation7 + $0x88] sm:$0xff]
    %v77 = vld [vmem:[#allocation7 + $0x90] sm:$0xff]
    %v78 = vld [vmem:[#allocation7 + $0x98] sm:$0xff]
    %v79 = vld [vmem:[#allocation7 + $0xa0] sm:$0xff]
    %v80 = vld [vmem:[#allocation7 + $0xa8] sm:$0xff]
    %v81 = vld [vmem:[#allocation7 + $0xb0] sm:$0xff]
    %v82 = vld [vmem:[#allocation7 + $0xb8] sm:$0xff]
    %v83 = vld [vmem:[#allocation7 + $0xc0] sm:$0xff]
    %v84 = vld [vmem:[#allocation7 + $0xc8] sm:$0xff]
    %v85 = vld [vmem:[#allocation7 + $0xd0] sm:$0xff]
    %v86 = vld [vmem:[#allocation7 + $0xd8] sm:$0xff]
    %v87 = vld [vmem:[#allocation7 + $0xe0] sm:$0xff]
    %v88 = vld [vmem:[#allocation7 + $0xe8] sm:$0xff]
    %v89 = vld [vmem:[#allocation7 + $0xf0] sm:$0xff]
    %v90 = vld [vmem:[#allocation7 + $0xf8] sm:$0xff]
    %v91 = vld [vmem:[#allocation7 + $0x100] sm:$0xff]
    %v92 = vld [vmem:[#allocation7 + $0x108] sm:$0xff]
    %v93 = vld [vmem:[#allocation7 + $0x110] sm:$0xff]
    %v94 = vld [vmem:[#allocation7 + $0x118] sm:$0xff]
    %v95 = vld [vmem:[#allocation7 + $0x120] sm:$0xff]
    %v96 = vld [vmem:[#allocation7 + $0x128] sm:$0xff]
    %v97 = vld [vmem:[#allocation7 + $0x130] sm:$0xff]
    %v98 = vld [vmem:[#allocation7 + $0x138] sm:$0xff]
    %v99 = vld [vmem:[#allocation7 + $0x140] sm:$0xff]
    %v100 = vld [vmem:[#allocation7 + $0x148] sm:$0xff]
    %v101 = vld [vmem:[#allocation7 + $0x150] sm:$0xff]
    %v102 = vld [vmem:[#allocation7 + $0x158] sm:$0xff]
    %v103 = vld [vmem:[#allocation7 + $0x160] sm:$0xff]
    %v104 = vld [vmem:[#allocation7 + $0x168] sm:$0xff]
    %v105 = vld [vmem:[#allocation7 + $0x170] sm:$0xff]
    %v106 = vld [vmem:[#allocation7 + $0x178] sm:$0xff]
    %v107 = vld [vmem:[#allocation7 + $0x180] sm:$0xff]
    %v108 = vld [vmem:[#allocation7 + $0x188] sm:$0xff]
    %v109 = vld [vmem:[#allocation7 + $0x190] sm:$0xff]
    %v110 = vld [vmem:[#allocation7 + $0x198] sm:$0xff]
    %v111 = vld [vmem:[#allocation7 + $0x1a0] sm:$0xff]
    %v112 = vld [vmem:[#allocation7 + $0x1a8] sm:$0xff]
    %v113 = vld [vmem:[#allocation7 + $0x1b0] sm:$0xff]
    %v114 = vld [vmem:[#allocation7 + $0x1b8] sm:$0xff]
    %v115 = vld [vmem:[#allocation7 + $0x1c0] sm:$0xff]
    %v116 = vld [vmem:[#allocation7 + $0x1c8] sm:$0xff]
    %v117 = vld [vmem:[#allocation7 + $0x1d0] sm:$0xff]
    %v118 = vld [vmem:[#allocation7 + $0x1d8] sm:$0xff]
    %v119 = vld [vmem:[#allocation7 + $0x1e0] sm:$0xff]
    %v120 = vld [vmem:[#allocation7 + $0x1e8] sm:$0xff]
    %v121 = vld [vmem:[#allocation7 + $0x1f0] sm:$0xff]
    %v122 = vld [vmem:[#allocation7 + $0x1f8] sm:$0xff]
    %v123 = vld [vmem:[%s3] sm:$0xf]
    %v124 = vld [vmem:[%s4] sm:$0xf]
    %v125 = vld [vmem:[%s4 + $0x4] sm:$0xf]
    %v126 = vld [vmem:[%s4 + $0x8] sm:$0xf]
    %v127 = vld [vmem:[%s4 + $0xc] sm:$0xf]
    %v128 = vld [vmem:[%s4 + $0x10] sm:$0xf]
    %v129 = vld [vmem:[%s4 + $0x14] sm:$0xf]
    %v130 = vld [vmem:[%s4 + $0x18] sm:$0xf]
    %v131 = vld [vmem:[%s4 + $0x1c] sm:$0xf]
    %v132 = vld [vmem:[%s4 + $0x20] sm:$0xf]
    %v133 = vld [vmem:[%s4 + $0x24] sm:$0xf]
    %v134 = vld [vmem:[%s4 + $0x28] sm:$0xf]
    %v135 = vld [vmem:[%s4 + $0x2c] sm:$0xf]
    %v136 = vld [vmem:[%s4 + $0x30] sm:$0xf]
    %v137 = vld [vmem:[%s4 + $0x34] sm:$0xf]
    %v138 = vld [vmem:[%s4 + $0x38] sm:$0xf]
    %v139 = vld [vmem:[%s4 + $0x3c] sm:$0xf]
    %v140 = vld [vmem:[%s5] sm:$0x1]
    %v141 = vld [vmem:[#allocation2] sm:$0xff]
    %v142 = vld [vmem:[#allocation3] sm:$0xff]
    %v143 = vld [vmem:[#allocation4] sm:$0xf]
    %v144 = vld [vmem:[%s1] sm:$0xff]
    %v145 = vpack.c.bf16 %v142, %v142
    %v147 = vlaneseq
    %v148 = vshrl.u32 %v147, 7
    %v149 = vsub.s32 0, %v148
    %v150 = vrot.slane %v140, %v149
    %v168 = vunpack.c.l.b16 %v124
    %v169 = vunpack.c.l.b16 %v125
    %v170 = vunpack.c.l.b16 %v126
    %v171 = vunpack.c.l.b16 %v127
    %v172 = vunpack.c.l.b16 %v128
    %v173 = vunpack.c.l.b16 %v129
    %v174 = vunpack.c.l.b16 %v130
    %v175 = vunpack.c.l.b16 %v131
    %v176 = vunpack.c.l.b16 %v132
    %v177 = vunpack.c.l.b16 %v133
    %v178 = vunpack.c.l.b16 %v134
    %v179 = vunpack.c.l.b16 %v135
    %v180 = vunpack.c.l.b16 %v136
    %v181 = vunpack.c.l.b16 %v137
    %v182 = vunpack.c.l.b16 %v138
    %v183 = vunpack.c.l.b16 %v139
    %v184 = vpack.c.b16 %v169, %v168
    %v185 = vpack.c.b16 %v171, %v170
    %v186 = vpack.c.b16 %v173, %v172
    %v187 = vpack.c.b16 %v175, %v174
    %v188 = vpack.c.b16 %v177, %v176
    %v189 = vpack.c.b16 %v179, %v178
    %v190 = vpack.c.b16 %v181, %v180
    %v191 = vpack.c.b16 %v183, %v182
    %200 = vmatprep.subr.bf16.mxu0 0
    %201 = vmatpush1.bf16.msra.mxu0 %v191
    %202 = vmatprep.subr.bf16.mxu0 0
    %203 = vmatpush1.bf16.msra.mxu0 %v190
    %204 = vmatprep.subr.bf16.mxu0 0
    %205 = vmatpush1.bf16.msra.mxu0 %v189
    %206 = vmatprep.subr.bf16.mxu0 0
    %207 = vmatpush1.bf16.msra.mxu0 %v188
    %208 = vmatprep.subr.bf16.mxu0 0
    %209 = vmatpush1.bf16.msra.mxu0 %v187
    %210 = vmatprep.subr.bf16.mxu0 0
    %211 = vmatpush1.bf16.msra.mxu0 %v186
    %212 = vmatprep.subr.bf16.mxu0 0
    %213 = vmatpush1.bf16.msra.mxu0 %v185
    %214 = vmatprep.subr.bf16.mxu0 0
    %215 = vmatpush1.bf16.msra.mxu0 %v184
    %216 = vmatprep.subr.bf16.mxu0 0
    %217 = vmatpush2.bf16.msra.mxu0 0
    %218 = vmatprep.subr.bf16.mxu0 0
    %219 = vmatpush2.bf16.msra.mxu0 0
    %220 = vmatprep.subr.bf16.mxu0 0
    %221 = vmatpush2.bf16.msra.mxu0 0
    %222 = vmatprep.subr.bf16.mxu0 0
    %223 = vmatpush2.bf16.msra.mxu0 0
    %224 = vmatprep.subr.bf16.mxu0 0
    %225 = vmatpush2.bf16.msra.mxu0 0
    %226 = vmatprep.subr.bf16.mxu0 0
    %227 = vmatpush2.bf16.msra.mxu0 0
    %228 = vmatprep.subr.bf16.mxu0 0
    %229 = vmatpush2.bf16.msra.mxu0 0
    %230 = vmatprep.subr.bf16.mxu0 0
    %231 = vmatpush2.bf16.msra.mxu0 0
    %232 = vmatprep.mubr.bf16.mxu0 0
    %233 = vmatmul.mubr.bf16.gmra.mxu0 %v145
    %v234 = vpop.f32.mrf.mxu0
    %v235 = vadd.f32 %v150, %v234
    %v236 = vpop.f32.mrf.mxu0
    %v237 = vpop.f32.mrf.mxu0
    %v238 = vpop.f32.mrf.mxu0
    %239 = vdwg.mxu0
    %v240 = vtanh.pop %v235
    %v241 = vsub.f32 %v142, %v240
    %243 = vset.pattern.permute.xlu0 0
    %244 = vperm.xlu0 %243, %v144
    %v245 = vpop.permute.xlu0 %244
    %v247 = vmul.f32 %v240, %v245
    %v248 = vadd.f32 %v241, %v247
    %v249 = vpack.c.bf16 %v141, %v141
    %v251 = vlaneseq
    %v252 = vshrl.u32 %v251, 7
    %v253 = vsub.s32 0, %v252
    %v254 = vrot.slane %v123, %v253
    %v255 = vlaneseq
    %v256 = vshrl.u32 %v255, 7
    %v257 = vsub.s32 1, %v256
    %v258 = vrot.slane %v123, %v257
    %v259 = vlaneseq
    %v260 = vshrl.u32 %v259, 7
    %v261 = vsub.s32 2, %v260
    %v262 = vrot.slane %v123, %v261
    %v263 = vlaneseq
    %v264 = vshrl.u32 %v263, 7
    %v265 = vsub.s32 3, %v264
    %v266 = vrot.slane %v123, %v265
    %v335 = vunpack.c.l.b16 %v59
    %v336 = vunpack.c.h.b16 %v59
    %v337 = vunpack.c.l.b16 %v60
    %v338 = vunpack.c.h.b16 %v60
    %v339 = vunpack.c.l.b16 %v61
    %v340 = vunpack.c.h.b16 %v61
    %v341 = vunpack.c.l.b16 %v62
    %v342 = vunpack.c.h.b16 %v62
    %v343 = vunpack.c.l.b16 %v63
    %v344 = vunpack.c.h.b16 %v63
    %v345 = vunpack.c.l.b16 %v64
    %v346 = vunpack.c.h.b16 %v64
    %v347 = vunpack.c.l.b16 %v65
    %v348 = vunpack.c.h.b16 %v65
    %v349 = vunpack.c.l.b16 %v66
    %v350 = vunpack.c.h.b16 %v66
    %v351 = vunpack.c.l.b16 %v67
    %v352 = vunpack.c.h.b16 %v67
    %v353 = vunpack.c.l.b16 %v68
    %v354 = vunpack.c.h.b16 %v68
    %v355 = vunpack.c.l.b16 %v69
    %v356 = vunpack.c.h.b16 %v69
    %v357 = vunpack.c.l.b16 %v70
    %v358 = vunpack.c.h.b16 %v70
    %v359 = vunpack.c.l.b16 %v71
    %v360 = vunpack.c.h.b16 %v71
    %v361 = vunpack.c.l.b16 %v72
    %v362 = vunpack.c.h.b16 %v72
    %v363 = vunpack.c.l.b16 %v73
    %v364 = vunpack.c.h.b16 %v73
    %v365 = vunpack.c.l.b16 %v74
    %v366 = vunpack.c.h.b16 %v74
    %v367 = vunpack.c.l.b16 %v75
    %v368 = vunpack.c.h.b16 %v75
    %v369 = vunpack.c.l.b16 %v76
    %v370 = vunpack.c.h.b16 %v76
    %v371 = vunpack.c.l.b16 %v77
    %v372 = vunpack.c.h.b16 %v77
    %v373 = vunpack.c.l.b16 %v78
    %v374 = vunpack.c.h.b16 %v78
    %v375 = vunpack.c.l.b16 %v79
    %v376 = vunpack.c.h.b16 %v79
    %v377 = vunpack.c.l.b16 %v80
    %v378 = vunpack.c.h.b16 %v80
    %v379 = vunpack.c.l.b16 %v81
    %v380 = vunpack.c.h.b16 %v81
    %v381 = vunpack.c.l.b16 %v82
    %v382 = vunpack.c.h.b16 %v82
    %v383 = vunpack.c.l.b16 %v83
    %v384 = vunpack.c.h.b16 %v83
    %v385 = vunpack.c.l.b16 %v84
    %v386 = vunpack.c.h.b16 %v84
    %v387 = vunpack.c.l.b16 %v85
    %v388 = vunpack.c.h.b16 %v85
    %v389 = vunpack.c.l.b16 %v86
    %v390 = vunpack.c.h.b16 %v86
    %v391 = vunpack.c.l.b16 %v87
    %v392 = vunpack.c.h.b16 %v87
    %v393 = vunpack.c.l.b16 %v88
    %v394 = vunpack.c.h.b16 %v88
    %v395 = vunpack.c.l.b16 %v89
    %v396 = vunpack.c.h.b16 %v89
    %v397 = vunpack.c.l.b16 %v90
    %v398 = vunpack.c.h.b16 %v90
    %v399 = vunpack.c.l.b16 %v91
    %v400 = vunpack.c.h.b16 %v91
    %v401 = vunpack.c.l.b16 %v92
    %v402 = vunpack.c.h.b16 %v92
    %v403 = vunpack.c.l.b16 %v93
    %v404 = vunpack.c.h.b16 %v93
    %v405 = vunpack.c.l.b16 %v94
    %v406 = vunpack.c.h.b16 %v94
    %v407 = vunpack.c.l.b16 %v95
    %v408 = vunpack.c.h.b16 %v95
    %v409 = vunpack.c.l.b16 %v96
    %v410 = vunpack.c.h.b16 %v96
    %v411 = vunpack.c.l.b16 %v97
    %v412 = vunpack.c.h.b16 %v97
    %v413 = vunpack.c.l.b16 %v98
    %v414 = vunpack.c.h.b16 %v98
    %v415 = vunpack.c.l.b16 %v99
    %v416 = vunpack.c.h.b16 %v99
    %v417 = vunpack.c.l.b16 %v100
    %v418 = vunpack.c.h.b16 %v100
    %v419 = vunpack.c.l.b16 %v101
    %v420 = vunpack.c.h.b16 %v101
    %v421 = vunpack.c.l.b16 %v102
    %v422 = vunpack.c.h.b16 %v102
    %v423 = vunpack.c.l.b16 %v103
    %v424 = vunpack.c.h.b16 %v103
    %v425 = vunpack.c.l.b16 %v104
    %v426 = vunpack.c.h.b16 %v104
    %v427 = vunpack.c.l.b16 %v105
    %v428 = vunpack.c.h.b16 %v105
    %v429 = vunpack.c.l.b16 %v106
    %v430 = vunpack.c.h.b16 %v106
    %v431 = vunpack.c.l.b16 %v107
    %v432 = vunpack.c.h.b16 %v107
    %v433 = vunpack.c.l.b16 %v108
    %v434 = vunpack.c.h.b16 %v108
    %v435 = vunpack.c.l.b16 %v109
    %v436 = vunpack.c.h.b16 %v109
    %v437 = vunpack.c.l.b16 %v110
    %v438 = vunpack.c.h.b16 %v110
    %v439 = vunpack.c.l.b16 %v111
    %v440 = vunpack.c.h.b16 %v111
    %v441 = vunpack.c.l.b16 %v112
    %v442 = vunpack.c.h.b16 %v112
    %v443 = vunpack.c.l.b16 %v113
    %v444 = vunpack.c.h.b16 %v113
    %v445 = vunpack.c.l.b16 %v114
    %v446 = vunpack.c.h.b16 %v114
    %v447 = vunpack.c.l.b16 %v115
    %v448 = vunpack.c.h.b16 %v115
    %v449 = vunpack.c.l.b16 %v116
    %v450 = vunpack.c.h.b16 %v116
    %v451 = vunpack.c.l.b16 %v117
    %v452 = vunpack.c.h.b16 %v117
    %v453 = vunpack.c.l.b16 %v118
    %v454 = vunpack.c.h.b16 %v118
    %v455 = vunpack.c.l.b16 %v119
    %v456 = vunpack.c.h.b16 %v119
    %v457 = vunpack.c.l.b16 %v120
    %v458 = vunpack.c.h.b16 %v120
    %v459 = vunpack.c.l.b16 %v121
    %v460 = vunpack.c.h.b16 %v121
    %v461 = vunpack.c.l.b16 %v122
    %v462 = vunpack.c.h.b16 %v122
    %v463 = vpack.c.b16 %v339, %v335
    %v464 = vpack.c.b16 %v340, %v336
    %v465 = vpack.c.b16 %v341, %v337
    %v466 = vpack.c.b16 %v342, %v338
    %v467 = vpack.c.b16 %v347, %v343
    %v468 = vpack.c.b16 %v348, %v344
    %v469 = vpack.c.b16 %v349, %v345
    %v470 = vpack.c.b16 %v350, %v346
    %v471 = vpack.c.b16 %v355, %v351
    %v472 = vpack.c.b16 %v356, %v352
    %v473 = vpack.c.b16 %v357, %v353
    %v474 = vpack.c.b16 %v358, %v354
    %v475 = vpack.c.b16 %v363, %v359
    %v476 = vpack.c.b16 %v364, %v360
    %v477 = vpack.c.b16 %v365, %v361
    %v478 = vpack.c.b16 %v366, %v362
    %v479 = vpack.c.b16 %v371, %v367
    %v480 = vpack.c.b16 %v372, %v368
    %v481 = vpack.c.b16 %v373, %v369
    %v482 = vpack.c.b16 %v374, %v370
    %v483 = vpack.c.b16 %v379, %v375
    %v484 = vpack.c.b16 %v380, %v376
    %v485 = vpack.c.b16 %v381, %v377
    %v486 = vpack.c.b16 %v382, %v378
    %v487 = vpack.c.b16 %v387, %v383
    %v488 = vpack.c.b16 %v388, %v384
    %v489 = vpack.c.b16 %v389, %v385
    %v490 = vpack.c.b16 %v390, %v386
    %v491 = vpack.c.b16 %v395, %v391
    %v492 = vpack.c.b16 %v396, %v392
    %v493 = vpack.c.b16 %v397, %v393
    %v494 = vpack.c.b16 %v398, %v394
    %v495 = vpack.c.b16 %v403, %v399
    %v496 = vpack.c.b16 %v404, %v400
    %v497 = vpack.c.b16 %v405, %v401
    %v498 = vpack.c.b16 %v406, %v402
    %v499 = vpack.c.b16 %v411, %v407
    %v500 = vpack.c.b16 %v412, %v408
    %v501 = vpack.c.b16 %v413, %v409
    %v502 = vpack.c.b16 %v414, %v410
    %v503 = vpack.c.b16 %v419, %v415
    %v504 = vpack.c.b16 %v420, %v416
    %v505 = vpack.c.b16 %v421, %v417
    %v506 = vpack.c.b16 %v422, %v418
    %v507 = vpack.c.b16 %v427, %v423
    %v508 = vpack.c.b16 %v428, %v424
    %v509 = vpack.c.b16 %v429, %v425
    %v510 = vpack.c.b16 %v430, %v426
    %v511 = vpack.c.b16 %v435, %v431
    %v512 = vpack.c.b16 %v436, %v432
    %v513 = vpack.c.b16 %v437, %v433
    %v514 = vpack.c.b16 %v438, %v434
    %v515 = vpack.c.b16 %v443, %v439
    %v516 = vpack.c.b16 %v444, %v440
    %v517 = vpack.c.b16 %v445, %v441
    %v518 = vpack.c.b16 %v446, %v442
    %v519 = vpack.c.b16 %v451, %v447
    %v520 = vpack.c.b16 %v452, %v448
    %v521 = vpack.c.b16 %v453, %v449
    %v522 = vpack.c.b16 %v454, %v450
    %v523 = vpack.c.b16 %v459, %v455
    %v524 = vpack.c.b16 %v460, %v456
    %v525 = vpack.c.b16 %v461, %v457
    %v526 = vpack.c.b16 %v462, %v458
    %591 = vmatprep.subr.bf16.mxu0 %v492
    %592 = vmatpush1.bf16.msra.mxu0 %v491
    %593 = vmatprep.subr.bf16.mxu0 %v488
    %594 = vmatpush1.bf16.msra.mxu0 %v487
    %595 = vmatprep.subr.bf16.mxu0 %v484
    %596 = vmatpush1.bf16.msra.mxu0 %v483
    %597 = vmatprep.subr.bf16.mxu0 %v480
    %598 = vmatpush1.bf16.msra.mxu0 %v479
    %599 = vmatprep.subr.bf16.mxu0 %v476
    %600 = vmatpush1.bf16.msra.mxu0 %v475
    %601 = vmatprep.subr.bf16.mxu0 %v472
    %602 = vmatpush1.bf16.msra.mxu0 %v471
    %603 = vmatprep.subr.bf16.mxu0 %v468
    %604 = vmatpush1.bf16.msra.mxu0 %v467
    %605 = vmatprep.subr.bf16.mxu0 %v464
    %606 = vmatpush1.bf16.msra.mxu0 %v463
    %607 = vmatprep.subr.bf16.mxu0 %v524
    %608 = vmatpush2.bf16.msra.mxu0 %v523
    %609 = vmatprep.subr.bf16.mxu0 %v520
    %610 = vmatpush2.bf16.msra.mxu0 %v519
    %611 = vmatprep.subr.bf16.mxu0 %v516
    %612 = vmatpush2.bf16.msra.mxu0 %v515
    %613 = vmatprep.subr.bf16.mxu0 %v512
    %614 = vmatpush2.bf16.msra.mxu0 %v511
    %615 = vmatprep.subr.bf16.mxu0 %v508
    %616 = vmatpush2.bf16.msra.mxu0 %v507
    %617 = vmatprep.subr.bf16.mxu0 %v504
    %618 = vmatpush2.bf16.msra.mxu0 %v503
    %619 = vmatprep.subr.bf16.mxu0 %v500
    %620 = vmatpush2.bf16.msra.mxu0 %v499
    %621 = vmatprep.subr.bf16.mxu0 %v496
    %622 = vmatpush2.bf16.msra.mxu0 %v495
    %623 = vmatprep.mubr.bf16.mxu0 %v143
    %624 = vmatmul.mubr.bf16.gmra.mxu0 %v249
    %v625 = vpop.f32.mrf.mxu0
    %v626 = vadd.f32 %v254, %v625
    %v627 = vpop.f32.mrf.mxu0
    %v628 = vadd.f32 %v258, %v627
    %v629 = vpop.f32.mrf.mxu0
    %v630 = vpop.f32.mrf.mxu0
    %631 = vdwg.mxu0
    %632 = vmatprep.subr.bf16.mxu0 %v494
    %633 = vmatpush1.bf16.msra.mxu0 %v493
    %634 = vmatprep.subr.bf16.mxu0 %v490
    %635 = vmatpush1.bf16.msra.mxu0 %v489
    %636 = vmatprep.subr.bf16.mxu0 %v486
    %637 = vmatpush1.bf16.msra.mxu0 %v485
    %638 = vmatprep.subr.bf16.mxu0 %v482
    %639 = vmatpush1.bf16.msra.mxu0 %v481
    %640 = vmatprep.subr.bf16.mxu0 %v478
    %641 = vmatpush1.bf16.msra.mxu0 %v477
    %642 = vmatprep.subr.bf16.mxu0 %v474
    %643 = vmatpush1.bf16.msra.mxu0 %v473
    %644 = vmatprep.subr.bf16.mxu0 %v470
    %645 = vmatpush1.bf16.msra.mxu0 %v469
    %646 = vmatprep.subr.bf16.mxu0 %v466
    %647 = vmatpush1.bf16.msra.mxu0 %v465
    %648 = vmatprep.subr.bf16.mxu0 %v526
    %649 = vmatpush2.bf16.msra.mxu0 %v525
    %650 = vmatprep.subr.bf16.mxu0 %v522
    %651 = vmatpush2.bf16.msra.mxu0 %v521
    %652 = vmatprep.subr.bf16.mxu0 %v518
    %653 = vmatpush2.bf16.msra.mxu0 %v517
    %654 = vmatprep.subr.bf16.mxu0 %v514
    %655 = vmatpush2.bf16.msra.mxu0 %v513
    %656 = vmatprep.subr.bf16.mxu0 %v510
    %657 = vmatpush2.bf16.msra.mxu0 %v509
    %658 = vmatprep.subr.bf16.mxu0 %v506
    %659 = vmatpush2.bf16.msra.mxu0 %v505
    %660 = vmatprep.subr.bf16.mxu0 %v502
    %661 = vmatpush2.bf16.msra.mxu0 %v501
    %662 = vmatprep.subr.bf16.mxu0 %v498
    %663 = vmatpush2.bf16.msra.mxu0 %v497
    %664 = vmatprep.mubr.bf16.mxu0 %v143
    %665 = vmatmul.mubr.bf16.gmra.mxu0 %v249
    %v666 = vpop.f32.mrf.mxu0
    %v667 = vadd.f32 %v262, %v666
    %v668 = vpop.f32.mrf.mxu0
    %v669 = vadd.f32 %v266, %v668
    %v670 = vpop.f32.mrf.mxu0
    %v671 = vpop.f32.mrf.mxu0
    %672 = vdwg.mxu0
    %v673 = vxor.u32 %v626, 2147483648
    %v674 = vmul.f32 %v673, 1.442695
    %v675 = vpow.pop %v674
    %v676 = vadd.f32 %v675, 1.0
    %v677 = vrcp.pop %v676
    %v678 = vmul.f32 1.0, %v677
    %v679 = vxor.u32 %v628, 2147483648
    %v680 = vmul.f32 %v679, 1.442695
    %v681 = vpow.pop %v680
    %v682 = vadd.f32 %v681, 1.0
    %v683 = vrcp.pop %v682
    %v684 = vmul.f32 1.0, %v683
    %v685 = vxor.u32 %v667, 2147483648
    %v686 = vmul.f32 %v685, 1.442695
    %v687 = vpow.pop %v686
    %v688 = vadd.f32 %v687, 1.0
    %v689 = vrcp.pop %v688
    %v690 = vmul.f32 1.0, %v689
    %v691 = vxor.u32 %v669, 2147483648
    %v692 = vmul.f32 %v691, 1.442695
    %v693 = vpow.pop %v692
    %v694 = vadd.f32 %v693, 1.0
    %v695 = vrcp.pop %v694
    %v696 = vmul.f32 1.0, %v695
    %v697 = vmul.f32 %v678, %v248
    %v698 = vmul.f32 %v684, %v696
    %v699 = vadd.f32 %v697, %v698
    %v700 = vtanh.pop %v699
    %v701 = vmul.f32 %v690, %v700
    %702 = vst [vmem:[#allocation9] sm:$0xff] %v701
    %s703 = scalar_lea.vmem [#allocation4], 4
    %v704 = vld [vmem:[%s703] sm:$0xf]
    %s705 = scalar_lea.vmem %s1, 8
    %v706 = vld [vmem:[%s705] sm:$0xff]
    %v707 = vpack.c.bf16 %v699, %v699
    %708 = vmatprep.subr.bf16.mxu0 0
    %709 = vmatpush1.bf16.msra.mxu0 %v191
    %710 = vmatprep.subr.bf16.mxu0 0
    %711 = vmatpush1.bf16.msra.mxu0 %v190
    %712 = vmatprep.subr.bf16.mxu0 0
    %713 = vmatpush1.bf16.msra.mxu0 %v189
    %714 = vmatprep.subr.bf16.mxu0 0
    %715 = vmatpush1.bf16.msra.mxu0 %v188
    %716 = vmatprep.subr.bf16.mxu0 0
    %717 = vmatpush1.bf16.msra.mxu0 %v187
    %718 = vmatprep.subr.bf16.mxu0 0
    %719 = vmatpush1.bf16.msra.mxu0 %v186
    %720 = vmatprep.subr.bf16.mxu0 0
    %721 = vmatpush1.bf16.msra.mxu0 %v185
    %722 = vmatprep.subr.bf16.mxu0 0
    %723 = vmatpush1.bf16.msra.mxu0 %v184
    %724 = vmatprep.subr.bf16.mxu0 0
    %725 = vmatpush2.bf16.msra.mxu0 0
    %726 = vmatprep.subr.bf16.mxu0 0
    %727 = vmatpush2.bf16.msra.mxu0 0
    %728 = vmatprep.subr.bf16.mxu0 0
    %729 = vmatpush2.bf16.msra.mxu0 0
    %730 = vmatprep.subr.bf16.mxu0 0
    %731 = vmatpush2.bf16.msra.mxu0 0
    %732 = vmatprep.subr.bf16.mxu0 0
    %733 = vmatpush2.bf16.msra.mxu0 0
    %734 = vmatprep.subr.bf16.mxu0 0
    %735 = vmatpush2.bf16.msra.mxu0 0
    %736 = vmatprep.subr.bf16.mxu0 0
    %737 = vmatpush2.bf16.msra.mxu0 0
    %738 = vmatprep.subr.bf16.mxu0 0
    %739 = vmatpush2.bf16.msra.mxu0 0
    %740 = vmatprep.mubr.bf16.mxu0 0
    %741 = vmatmul.mubr.bf16.gmra.mxu0 %v707
    %v742 = vpop.f32.mrf.mxu0
    %v743 = vadd.f32 %v150, %v742
    %v744 = vpop.f32.mrf.mxu0
    %v745 = vpop.f32.mrf.mxu0
    %v746 = vpop.f32.mrf.mxu0
    %747 = vdwg.mxu0
    %v748 = vtanh.pop %v743
    %v749 = vsub.f32 %v699, %v748
    %751 = vset.pattern.permute.xlu0 0
    %752 = vperm.xlu0 %751, %v706
    %v753 = vpop.permute.xlu0 %752
    %v755 = vmul.f32 %v748, %v753
    %v756 = vadd.f32 %v749, %v755
    %v757 = vpack.c.bf16 %v701, %v701
    %758 = vmatprep.subr.bf16.mxu0 %v492
    %759 = vmatpush1.bf16.msra.mxu0 %v491
    %760 = vmatprep.subr.bf16.mxu0 %v488
    %761 = vmatpush1.bf16.msra.mxu0 %v487
    %762 = vmatprep.subr.bf16.mxu0 %v484
    %763 = vmatpush1.bf16.msra.mxu0 %v483
    %764 = vmatprep.subr.bf16.mxu0 %v480
    %765 = vmatpush1.bf16.msra.mxu0 %v479
    %766 = vmatprep.subr.bf16.mxu0 %v476
    %767 = vmatpush1.bf16.msra.mxu0 %v475
    %768 = vmatprep.subr.bf16.mxu0 %v472
    %769 = vmatpush1.bf16.msra.mxu0 %v471
    %770 = vmatprep.subr.bf16.mxu0 %v468
    %771 = vmatpush1.bf16.msra.mxu0 %v467
    %772 = vmatprep.subr.bf16.mxu0 %v464
    %773 = vmatpush1.bf16.msra.mxu0 %v463
    %774 = vmatprep.subr.bf16.mxu0 %v524
    %775 = vmatpush2.bf16.msra.mxu0 %v523
    %776 = vmatprep.subr.bf16.mxu0 %v520
    %777 = vmatpush2.bf16.msra.mxu0 %v519
    %778 = vmatprep.subr.bf16.mxu0 %v516
    %779 = vmatpush2.bf16.msra.mxu0 %v515
    %780 = vmatprep.subr.bf16.mxu0 %v512
    %781 = vmatpush2.bf16.msra.mxu0 %v511
    %782 = vmatprep.subr.bf16.mxu0 %v508
    %783 = vmatpush2.bf16.msra.mxu0 %v507
    %784 = vmatprep.subr.bf16.mxu0 %v504
    %785 = vmatpush2.bf16.msra.mxu0 %v503
    %786 = vmatprep.subr.bf16.mxu0 %v500
    %787 = vmatpush2.bf16.msra.mxu0 %v499
    %788 = vmatprep.subr.bf16.mxu0 %v496
    %789 = vmatpush2.bf16.msra.mxu0 %v495
    %790 = vmatprep.mubr.bf16.mxu0 %v704
    %791 = vmatmul.mubr.bf16.gmra.mxu0 %v757
    %v792 = vpop.f32.mrf.mxu0
    %v793 = vadd.f32 %v254, %v792
    %v794 = vpop.f32.mrf.mxu0
    %v795 = vadd.f32 %v258, %v794
    %v796 = vpop.f32.mrf.mxu0
    %v797 = vpop.f32.mrf.mxu0
    %798 = vdwg.mxu0
    %799 = vmatprep.subr.bf16.mxu0 %v494
    %800 = vmatpush1.bf16.msra.mxu0 %v493
    %801 = vmatprep.subr.bf16.mxu0 %v490
    %802 = vmatpush1.bf16.msra.mxu0 %v489
    %803 = vmatprep.subr.bf16.mxu0 %v486
    %804 = vmatpush1.bf16.msra.mxu0 %v485
    %805 = vmatprep.subr.bf16.mxu0 %v482
    %806 = vmatpush1.bf16.msra.mxu0 %v481
    %807 = vmatprep.subr.bf16.mxu0 %v478
    %808 = vmatpush1.bf16.msra.mxu0 %v477
    %809 = vmatprep.subr.bf16.mxu0 %v474
    %810 = vmatpush1.bf16.msra.mxu0 %v473
    %811 = vmatprep.subr.bf16.mxu0 %v470
    %812 = vmatpush1.bf16.msra.mxu0 %v469
    %813 = vmatprep.subr.bf16.mxu0 %v466
    %814 = vmatpush1.bf16.msra.mxu0 %v465
    %815 = vmatprep.subr.bf16.mxu0 %v526
    %816 = vmatpush2.bf16.msra.mxu0 %v525
    %817 = vmatprep.subr.bf16.mxu0 %v522
    %818 = vmatpush2.bf16.msra.mxu0 %v521
    %819 = vmatprep.subr.bf16.mxu0 %v518
    %820 = vmatpush2.bf16.msra.mxu0 %v517
    %821 = vmatprep.subr.bf16.mxu0 %v514
    %822 = vmatpush2.bf16.msra.mxu0 %v513
    %823 = vmatprep.subr.bf16.mxu0 %v510
    %824 = vmatpush2.bf16.msra.mxu0 %v509
    %825 = vmatprep.subr.bf16.mxu0 %v506
    %826 = vmatpush2.bf16.msra.mxu0 %v505
    %827 = vmatprep.subr.bf16.mxu0 %v502
    %828 = vmatpush2.bf16.msra.mxu0 %v501
    %829 = vmatprep.subr.bf16.mxu0 %v498
    %830 = vmatpush2.bf16.msra.mxu0 %v497
    %831 = vmatprep.mubr.bf16.mxu0 %v704
    %832 = vmatmul.mubr.bf16.gmra.mxu0 %v757
    %v833 = vpop.f32.mrf.mxu0
    %v834 = vadd.f32 %v262, %v833
    %v835 = vpop.f32.mrf.mxu0
    %v836 = vadd.f32 %v266, %v835
    %v837 = vpop.f32.mrf.mxu0
    %v838 = vpop.f32.mrf.mxu0
    %839 = vdwg.mxu0
    %v840 = vxor.u32 %v793, 2147483648
    %v841 = vmul.f32 %v840, 1.442695
    %v842 = vpow.pop %v841
    %v843 = vadd.f32 %v842, 1.0
    %v844 = vrcp.pop %v843
    %v845 = vmul.f32 1.0, %v844
    %v846 = vxor.u32 %v795, 2147483648
    %v847 = vmul.f32 %v846, 1.442695
    %v848 = vpow.pop %v847
    %v849 = vadd.f32 %v848, 1.0
    %v850 = vrcp.pop %v849
    %v851 = vmul.f32 1.0, %v850
    %v852 = vxor.u32 %v834, 2147483648
    %v853 = vmul.f32 %v852, 1.442695
    %v854 = vpow.pop %v853
    %v855 = vadd.f32 %v854, 1.0
    %v856 = vrcp.pop %v855
    %v857 = vmul.f32 1.0, %v856
    %v858 = vxor.u32 %v836, 2147483648
    %v859 = vmul.f32 %v858, 1.442695
    %v860 = vpow.pop %v859
    %v861 = vadd.f32 %v860, 1.0
    %v862 = vrcp.pop %v861
    %v863 = vmul.f32 1.0, %v862
    %v864 = vmul.f32 %v845, %v756
    %v865 = vmul.f32 %v851, %v863
    %v866 = vadd.f32 %v864, %v865
    %v867 = vtanh.pop %v866
    %v868 = vmul.f32 %v857, %v867
    %s869 = scalar_lea.vmem [#allocation9], 8
    %870 = vst [vmem:[%s869] sm:$0xff] %v868
    %s871 = scalar_lea.vmem [#allocation4], 8
    %v872 = vld [vmem:[%s871] sm:$0xf]
    %s873 = scalar_lea.vmem %s1, 16
    %v874 = vld [vmem:[%s873] sm:$0xff]
    %v875 = vpack.c.bf16 %v866, %v866
    %876 = vmatprep.subr.bf16.mxu0 0
    %877 = vmatpush1.bf16.msra.mxu0 %v191
    %878 = vmatprep.subr.bf16.mxu0 0
    %879 = vmatpush1.bf16.msra.mxu0 %v190
    %880 = vmatprep.subr.bf16.mxu0 0
    %881 = vmatpush1.bf16.msra.mxu0 %v189
    %882 = vmatprep.subr.bf16.mxu0 0
    %883 = vmatpush1.bf16.msra.mxu0 %v188
    %884 = vmatprep.subr.bf16.mxu0 0
    %885 = vmatpush1.bf16.msra.mxu0 %v187
    %886 = vmatprep.subr.bf16.mxu0 0
    %887 = vmatpush1.bf16.msra.mxu0 %v186
    %888 = vmatprep.subr.bf16.mxu0 0
    %889 = vmatpush1.bf16.msra.mxu0 %v185
    %890 = vmatprep.subr.bf16.mxu0 0
    %891 = vmatpush1.bf16.msra.mxu0 %v184
    %892 = vmatprep.subr.bf16.mxu0 0
    %893 = vmatpush2.bf16.msra.mxu0 0
    %894 = vmatprep.subr.bf16.mxu0 0
    %895 = vmatpush2.bf16.msra.mxu0 0
    %896 = vmatprep.subr.bf16.mxu0 0
    %897 = vmatpush2.bf16.msra.mxu0 0
    %898 = vmatprep.subr.bf16.mxu0 0
    %899 = vmatpush2.bf16.msra.mxu0 0
    %900 = vmatprep.subr.bf16.mxu0 0
    %901 = vmatpush2.bf16.msra.mxu0 0
    %902 = vmatprep.subr.bf16.mxu0 0
    %903 = vmatpush2.bf16.msra.mxu0 0
    %904 = vmatprep.subr.bf16.mxu0 0
    %905 = vmatpush2.bf16.msra.mxu0 0
    %906 = vmatprep.subr.bf16.mxu0 0
    %907 = vmatpush2.bf16.msra.mxu0 0
    %908 = vmatprep.mubr.bf16.mxu0 0
    %909 = vmatmul.mubr.bf16.gmra.mxu0 %v875
    %v910 = vpop.f32.mrf.mxu0
    %v911 = vadd.f32 %v150, %v910
    %v912 = vpop.f32.mrf.mxu0
    %v913 = vpop.f32.mrf.mxu0
    %v914 = vpop.f32.mrf.mxu0
    %915 = vdwg.mxu0
    %v916 = vtanh.pop %v911
    %v917 = vsub.f32 %v866, %v916
    %919 = vset.pattern.permute.xlu0 0
    %920 = vperm.xlu0 %919, %v874
    %v921 = vpop.permute.xlu0 %920
    %v923 = vmul.f32 %v916, %v921
    %v924 = vadd.f32 %v917, %v923
    %v925 = vpack.c.bf16 %v868, %v868
    %926 = vmatprep.subr.bf16.mxu0 %v492
    %927 = vmatpush1.bf16.msra.mxu0 %v491
    %928 = vmatprep.subr.bf16.mxu0 %v488
    %929 = vmatpush1.bf16.msra.mxu0 %v487
    %930 = vmatprep.subr.bf16.mxu0 %v484
    %931 = vmatpush1.bf16.msra.mxu0 %v483
    %932 = vmatprep.subr.bf16.mxu0 %v480
    %933 = vmatpush1.bf16.msra.mxu0 %v479
    %934 = vmatprep.subr.bf16.mxu0 %v476
    %935 = vmatpush1.bf16.msra.mxu0 %v475
    %936 = vmatprep.subr.bf16.mxu0 %v472
    %937 = vmatpush1.bf16.msra.mxu0 %v471
    %938 = vmatprep.subr.bf16.mxu0 %v468
    %939 = vmatpush1.bf16.msra.mxu0 %v467
    %940 = vmatprep.subr.bf16.mxu0 %v464
    %941 = vmatpush1.bf16.msra.mxu0 %v463
    %942 = vmatprep.subr.bf16.mxu0 %v524
    %943 = vmatpush2.bf16.msra.mxu0 %v523
    %944 = vmatprep.subr.bf16.mxu0 %v520
    %945 = vmatpush2.bf16.msra.mxu0 %v519
    %946 = vmatprep.subr.bf16.mxu0 %v516
    %947 = vmatpush2.bf16.msra.mxu0 %v515
    %948 = vmatprep.subr.bf16.mxu0 %v512
    %949 = vmatpush2.bf16.msra.mxu0 %v511
    %950 = vmatprep.subr.bf16.mxu0 %v508
    %951 = vmatpush2.bf16.msra.mxu0 %v507
    %952 = vmatprep.subr.bf16.mxu0 %v504
    %953 = vmatpush2.bf16.msra.mxu0 %v503
    %954 = vmatprep.subr.bf16.mxu0 %v500
    %955 = vmatpush2.bf16.msra.mxu0 %v499
    %956 = vmatprep.subr.bf16.mxu0 %v496
    %957 = vmatpush2.bf16.msra.mxu0 %v495
    %958 = vmatprep.mubr.bf16.mxu0 %v872
    %959 = vmatmul.mubr.bf16.gmra.mxu0 %v925
    %v960 = vpop.f32.mrf.mxu0
    %v961 = vadd.f32 %v254, %v960
    %v962 = vpop.f32.mrf.mxu0
    %v963 = vadd.f32 %v258, %v962
    %v964 = vpop.f32.mrf.mxu0
    %v965 = vpop.f32.mrf.mxu0
    %966 = vdwg.mxu0
    %967 = vmatprep.subr.bf16.mxu0 %v494
    %968 = vmatpush1.bf16.msra.mxu0 %v493
    %969 = vmatprep.subr.bf16.mxu0 %v490
    %970 = vmatpush1.bf16.msra.mxu0 %v489
    %971 = vmatprep.subr.bf16.mxu0 %v486
    %972 = vmatpush1.bf16.msra.mxu0 %v485
    %973 = vmatprep.subr.bf16.mxu0 %v482
    %974 = vmatpush1.bf16.msra.mxu0 %v481
    %975 = vmatprep.subr.bf16.mxu0 %v478
    %976 = vmatpush1.bf16.msra.mxu0 %v477
    %977 = vmatprep.subr.bf16.mxu0 %v474
    %978 = vmatpush1.bf16.msra.mxu0 %v473
    %979 = vmatprep.subr.bf16.mxu0 %v470
    %980 = vmatpush1.bf16.msra.mxu0 %v469
    %981 = vmatprep.subr.bf16.mxu0 %v466
    %982 = vmatpush1.bf16.msra.mxu0 %v465
    %983 = vmatprep.subr.bf16.mxu0 %v526
    %984 = vmatpush2.bf16.msra.mxu0 %v525
    %985 = vmatprep.subr.bf16.mxu0 %v522
    %986 = vmatpush2.bf16.msra.mxu0 %v521
    %987 = vmatprep.subr.bf16.mxu0 %v518
    %988 = vmatpush2.bf16.msra.mxu0 %v517
    %989 = vmatprep.subr.bf16.mxu0 %v514
    %990 = vmatpush2.bf16.msra.mxu0 %v513
    %991 = vmatprep.subr.bf16.mxu0 %v510
    %992 = vmatpush2.bf16.msra.mxu0 %v509
    %993 = vmatprep.subr.bf16.mxu0 %v506
    %994 = vmatpush2.bf16.msra.mxu0 %v505
    %995 = vmatprep.subr.bf16.mxu0 %v502
    %996 = vmatpush2.bf16.msra.mxu0 %v501
    %997 = vmatprep.subr.bf16.mxu0 %v498
    %998 = vmatpush2.bf16.msra.mxu0 %v497
    %999 = vmatprep.mubr.bf16.mxu0 %v872
    %1000 = vmatmul.mubr.bf16.gmra.mxu0 %v925
    %v1001 = vpop.f32.mrf.mxu0
    %v1002 = vadd.f32 %v262, %v1001
    %v1003 = vpop.f32.mrf.mxu0
    %v1004 = vadd.f32 %v266, %v1003
    %v1005 = vpop.f32.mrf.mxu0
    %v1006 = vpop.f32.mrf.mxu0
    %1007 = vdwg.mxu0
    %v1008 = vxor.u32 %v961, 2147483648
    %v1009 = vmul.f32 %v1008, 1.442695
    %v1010 = vpow.pop %v1009
    %v1011 = vadd.f32 %v1010, 1.0
    %v1012 = vrcp.pop %v1011
    %v1013 = vmul.f32 1.0, %v1012
    %v1014 = vxor.u32 %v963, 2147483648
    %v1015 = vmul.f32 %v1014, 1.442695
    %v1016 = vpow.pop %v1015
    %v1017 = vadd.f32 %v1016, 1.0
    %v1018 = vrcp.pop %v1017
    %v1019 = vmul.f32 1.0, %v1018
    %v1020 = vxor.u32 %v1002, 2147483648
    %v1021 = vmul.f32 %v1020, 1.442695
    %v1022 = vpow.pop %v1021
    %v1023 = vadd.f32 %v1022, 1.0
    %v1024 = vrcp.pop %v1023
    %v1025 = vmul.f32 1.0, %v1024
    %v1026 = vxor.u32 %v1004, 2147483648
    %v1027 = vmul.f32 %v1026, 1.442695
    %v1028 = vpow.pop %v1027
    %v1029 = vadd.f32 %v1028, 1.0
    %v1030 = vrcp.pop %v1029
    %v1031 = vmul.f32 1.0, %v1030
    %v1032 = vmul.f32 %v1013, %v924
    %v1033 = vmul.f32 %v1019, %v1031
    %v1034 = vadd.f32 %v1032, %v1033
    %v1035 = vtanh.pop %v1034
    %v1036 = vmul.f32 %v1025, %v1035
    %s1037 = scalar_lea.vmem [#allocation9], 16
    %1038 = vst [vmem:[%s1037] sm:$0xff] %v1036
    %s1039 = scalar_lea.vmem [#allocation4], 12
    %v1040 = vld [vmem:[%s1039] sm:$0xf]
    %s1041 = scalar_lea.vmem %s1, 24
    %v1042 = vld [vmem:[%s1041] sm:$0xff]
    %v1043 = vpack.c.bf16 %v1034, %v1034
    %1044 = vmatprep.subr.bf16.mxu0 0
    %1045 = vmatpush1.bf16.msra.mxu0 %v191
    %1046 = vmatprep.subr.bf16.mxu0 0
    %1047 = vmatpush1.bf16.msra.mxu0 %v190
    %1048 = vmatprep.subr.bf16.mxu0 0
    %1049 = vmatpush1.bf16.msra.mxu0 %v189
    %1050 = vmatprep.subr.bf16.mxu0 0
    %1051 = vmatpush1.bf16.msra.mxu0 %v188
    %1052 = vmatprep.subr.bf16.mxu0 0
    %1053 = vmatpush1.bf16.msra.mxu0 %v187
    %1054 = vmatprep.subr.bf16.mxu0 0
    %1055 = vmatpush1.bf16.msra.mxu0 %v186
    %1056 = vmatprep.subr.bf16.mxu0 0
    %1057 = vmatpush1.bf16.msra.mxu0 %v185
    %1058 = vmatprep.subr.bf16.mxu0 0
    %1059 = vmatpush1.bf16.msra.mxu0 %v184
    %1060 = vmatprep.subr.bf16.mxu0 0
    %1061 = vmatpush2.bf16.msra.mxu0 0
    %1062 = vmatprep.subr.bf16.mxu0 0
    %1063 = vmatpush2.bf16.msra.mxu0 0
    %1064 = vmatprep.subr.bf16.mxu0 0
    %1065 = vmatpush2.bf16.msra.mxu0 0
    %1066 = vmatprep.subr.bf16.mxu0 0
    %1067 = vmatpush2.bf16.msra.mxu0 0
    %1068 = vmatprep.subr.bf16.mxu0 0
    %1069 = vmatpush2.bf16.msra.mxu0 0
    %1070 = vmatprep.subr.bf16.mxu0 0
    %1071 = vmatpush2.bf16.msra.mxu0 0
    %1072 = vmatprep.subr.bf16.mxu0 0
    %1073 = vmatpush2.bf16.msra.mxu0 0
    %1074 = vmatprep.subr.bf16.mxu0 0
    %1075 = vmatpush2.bf16.msra.mxu0 0
    %1076 = vmatprep.mubr.bf16.mxu0 0
    %1077 = vmatmul.mubr.bf16.gmra.mxu0 %v1043
    %v1078 = vpop.f32.mrf.mxu0
    %v1079 = vadd.f32 %v150, %v1078
    %v1080 = vpop.f32.mrf.mxu0
    %v1081 = vpop.f32.mrf.mxu0
    %v1082 = vpop.f32.mrf.mxu0
    %1083 = vdwg.mxu0
    %v1084 = vtanh.pop %v1079
    %v1085 = vsub.f32 %v1034, %v1084
    %1087 = vset.pattern.permute.xlu0 0
    %1088 = vperm.xlu0 %1087, %v1042
    %v1089 = vpop.permute.xlu0 %1088
    %v1091 = vmul.f32 %v1084, %v1089
    %v1092 = vadd.f32 %v1085, %v1091
    %v1093 = vpack.c.bf16 %v1036, %v1036
    %1094 = vmatprep.subr.bf16.mxu0 %v492
    %1095 = vmatpush1.bf16.msra.mxu0 %v491
    %1096 = vmatprep.subr.bf16.mxu0 %v488
    %1097 = vmatpush1.bf16.msra.mxu0 %v487
    %1098 = vmatprep.subr.bf16.mxu0 %v484
    %1099 = vmatpush1.bf16.msra.mxu0 %v483
    %1100 = vmatprep.subr.bf16.mxu0 %v480
    %1101 = vmatpush1.bf16.msra.mxu0 %v479
    %1102 = vmatprep.subr.bf16.mxu0 %v476
    %1103 = vmatpush1.bf16.msra.mxu0 %v475
    %1104 = vmatprep.subr.bf16.mxu0 %v472
    %1105 = vmatpush1.bf16.msra.mxu0 %v471
    %1106 = vmatprep.subr.bf16.mxu0 %v468
    %1107 = vmatpush1.bf16.msra.mxu0 %v467
    %1108 = vmatprep.subr.bf16.mxu0 %v464
    %1109 = vmatpush1.bf16.msra.mxu0 %v463
    %1110 = vmatprep.subr.bf16.mxu0 %v524
    %1111 = vmatpush2.bf16.msra.mxu0 %v523
    %1112 = vmatprep.subr.bf16.mxu0 %v520
    %1113 = vmatpush2.bf16.msra.mxu0 %v519
    %1114 = vmatprep.subr.bf16.mxu0 %v516
    %1115 = vmatpush2.bf16.msra.mxu0 %v515
    %1116 = vmatprep.subr.bf16.mxu0 %v512
    %1117 = vmatpush2.bf16.msra.mxu0 %v511
    %1118 = vmatprep.subr.bf16.mxu0 %v508
    %1119 = vmatpush2.bf16.msra.mxu0 %v507
    %1120 = vmatprep.subr.bf16.mxu0 %v504
    %1121 = vmatpush2.bf16.msra.mxu0 %v503
    %1122 = vmatprep.subr.bf16.mxu0 %v500
    %1123 = vmatpush2.bf16.msra.mxu0 %v499
    %1124 = vmatprep.subr.bf16.mxu0 %v496
    %1125 = vmatpush2.bf16.msra.mxu0 %v495
    %1126 = vmatprep.mubr.bf16.mxu0 %v1040
    %1127 = vmatmul.mubr.bf16.gmra.mxu0 %v1093
    %v1128 = vpop.f32.mrf.mxu0
    %v1129 = vadd.f32 %v254, %v1128
    %v1130 = vpop.f32.mrf.mxu0
    %v1131 = vadd.f32 %v258, %v1130
    %v1132 = vpop.f32.mrf.mxu0
    %v1133 = vpop.f32.mrf.mxu0
    %1134 = vdwg.mxu0
    %1135 = vmatprep.subr.bf16.mxu0 %v494
    %1136 = vmatpush1.bf16.msra.mxu0 %v493
    %1137 = vmatprep.subr.bf16.mxu0 %v490
    %1138 = vmatpush1.bf16.msra.mxu0 %v489
    %1139 = vmatprep.subr.bf16.mxu0 %v486
    %1140 = vmatpush1.bf16.msra.mxu0 %v485
    %1141 = vmatprep.subr.bf16.mxu0 %v482
    %1142 = vmatpush1.bf16.msra.mxu0 %v481
    %1143 = vmatprep.subr.bf16.mxu0 %v478
    %1144 = vmatpush1.bf16.msra.mxu0 %v477
    %1145 = vmatprep.subr.bf16.mxu0 %v474
    %1146 = vmatpush1.bf16.msra.mxu0 %v473
    %1147 = vmatprep.subr.bf16.mxu0 %v470
    %1148 = vmatpush1.bf16.msra.mxu0 %v469
    %1149 = vmatprep.subr.bf16.mxu0 %v466
    %1150 = vmatpush1.bf16.msra.mxu0 %v465
    %1151 = vmatprep.subr.bf16.mxu0 %v526
    %1152 = vmatpush2.bf16.msra.mxu0 %v525
    %1153 = vmatprep.subr.bf16.mxu0 %v522
    %1154 = vmatpush2.bf16.msra.mxu0 %v521
    %1155 = vmatprep.subr.bf16.mxu0 %v518
    %1156 = vmatpush2.bf16.msra.mxu0 %v517
    %1157 = vmatprep.subr.bf16.mxu0 %v514
    %1158 = vmatpush2.bf16.msra.mxu0 %v513
    %1159 = vmatprep.subr.bf16.mxu0 %v510
    %1160 = vmatpush2.bf16.msra.mxu0 %v509
    %1161 = vmatprep.subr.bf16.mxu0 %v506
    %1162 = vmatpush2.bf16.msra.mxu0 %v505
    %1163 = vmatprep.subr.bf16.mxu0 %v502
    %1164 = vmatpush2.bf16.msra.mxu0 %v501
    %1165 = vmatprep.subr.bf16.mxu0 %v498
    %1166 = vmatpush2.bf16.msra.mxu0 %v497
    %1167 = vmatprep.mubr.bf16.mxu0 %v1040
    %1168 = vmatmul.mubr.bf16.gmra.mxu0 %v1093
    %v1169 = vpop.f32.mrf.mxu0
    %v1170 = vadd.f32 %v262, %v1169
    %v1171 = vpop.f32.mrf.mxu0
    %v1172 = vadd.f32 %v266, %v1171
    %v1173 = vpop.f32.mrf.mxu0
    %v1174 = vpop.f32.mrf.mxu0
    %1175 = vdwg.mxu0
    %v1176 = vxor.u32 %v1129, 2147483648
    %v1177 = vmul.f32 %v1176, 1.442695
    %v1178 = vpow.pop %v1177
    %v1179 = vadd.f32 %v1178, 1.0
    %v1180 = vrcp.pop %v1179
    %v1181 = vmul.f32 1.0, %v1180
    %v1182 = vxor.u32 %v1131, 2147483648
    %v1183 = vmul.f32 %v1182, 1.442695
    %v1184 = vpow.pop %v1183
    %v1185 = vadd.f32 %v1184, 1.0
    %v1186 = vrcp.pop %v1185
    %v1187 = vmul.f32 1.0, %v1186
    %v1188 = vxor.u32 %v1170, 2147483648
    %v1189 = vmul.f32 %v1188, 1.442695
    %v1190 = vpow.pop %v1189
    %v1191 = vadd.f32 %v1190, 1.0
    %v1192 = vrcp.pop %v1191
    %v1193 = vmul.f32 1.0, %v1192
    %v1194 = vxor.u32 %v1172, 2147483648
    %v1195 = vmul.f32 %v1194, 1.442695
    %v1196 = vpow.pop %v1195
    %v1197 = vadd.f32 %v1196, 1.0
    %v1198 = vrcp.pop %v1197
    %v1199 = vmul.f32 1.0, %v1198
    %v1200 = vmul.f32 %v1181, %v1092
    %v1201 = vmul.f32 %v1187, %v1199
    %v1202 = vadd.f32 %v1200, %v1201
    %v1203 = vtanh.pop %v1202
    %v1204 = vmul.f32 %v1193, %v1203
    %s1205 = scalar_lea.vmem [#allocation9], 24
    %1206 = vst [vmem:[%s1205] sm:$0xff] %v1204
    %s1207 = scalar_lea.vmem [#allocation4], 16
    %v1208 = vld [vmem:[%s1207] sm:$0xf]
    %s1209 = scalar_lea.vmem %s1, 32
    %v1210 = vld [vmem:[%s1209] sm:$0xff]
    %v1211 = vpack.c.bf16 %v1202, %v1202
    %1212 = vmatprep.subr.bf16.mxu0 0
    %1213 = vmatpush1.bf16.msra.mxu0 %v191
    %1214 = vmatprep.subr.bf16.mxu0 0
    %1215 = vmatpush1.bf16.msra.mxu0 %v190
    %1216 = vmatprep.subr.bf16.mxu0 0
    %1217 = vmatpush1.bf16.msra.mxu0 %v189
    %1218 = vmatprep.subr.bf16.mxu0 0
    %1219 = vmatpush1.bf16.msra.mxu0 %v188
    %1220 = vmatprep.subr.bf16.mxu0 0
    %1221 = vmatpush1.bf16.msra.mxu0 %v187
    %1222 = vmatprep.subr.bf16.mxu0 0
    %1223 = vmatpush1.bf16.msra.mxu0 %v186
    %1224 = vmatprep.subr.bf16.mxu0 0
    %1225 = vmatpush1.bf16.msra.mxu0 %v185
    %1226 = vmatprep.subr.bf16.mxu0 0
    %1227 = vmatpush1.bf16.msra.mxu0 %v184
    %1228 = vmatprep.subr.bf16.mxu0 0
    %1229 = vmatpush2.bf16.msra.mxu0 0
    %1230 = vmatprep.subr.bf16.mxu0 0
    %1231 = vmatpush2.bf16.msra.mxu0 0
    %1232 = vmatprep.subr.bf16.mxu0 0
    %1233 = vmatpush2.bf16.msra.mxu0 0
    %1234 = vmatprep.subr.bf16.mxu0 0
    %1235 = vmatpush2.bf16.msra.mxu0 0
    %1236 = vmatprep.subr.bf16.mxu0 0
    %1237 = vmatpush2.bf16.msra.mxu0 0
    %1238 = vmatprep.subr.bf16.mxu0 0
    %1239 = vmatpush2.bf16.msra.mxu0 0
    %1240 = vmatprep.subr.bf16.mxu0 0
    %1241 = vmatpush2.bf16.msra.mxu0 0
    %1242 = vmatprep.subr.bf16.mxu0 0
    %1243 = vmatpush2.bf16.msra.mxu0 0
    %1244 = vmatprep.mubr.bf16.mxu0 0
    %1245 = vmatmul.mubr.bf16.gmra.mxu0 %v1211
    %v1246 = vpop.f32.mrf.mxu0
    %v1247 = vadd.f32 %v150, %v1246
    %v1248 = vpop.f32.mrf.mxu0
    %v1249 = vpop.f32.mrf.mxu0
    %v1250 = vpop.f32.mrf.mxu0
    %1251 = vdwg.mxu0
    %v1252 = vtanh.pop %v1247
    %v1253 = vsub.f32 %v1202, %v1252
    %1255 = vset.pattern.permute.xlu0 0
    %1256 = vperm.xlu0 %1255, %v1210
    %v1257 = vpop.permute.xlu0 %1256
    %v1259 = vmul.f32 %v1252, %v1257
    %v1260 = vadd.f32 %v1253, %v1259
    %v1261 = vpack.c.bf16 %v1204, %v1204
    %1262 = vmatprep.subr.bf16.mxu0 %v492
    %1263 = vmatpush1.bf16.msra.mxu0 %v491
    %1264 = vmatprep.subr.bf16.mxu0 %v488
    %1265 = vmatpush1.bf16.msra.mxu0 %v487
    %1266 = vmatprep.subr.bf16.mxu0 %v484
    %1267 = vmatpush1.bf16.msra.mxu0 %v483
    %1268 = vmatprep.subr.bf16.mxu0 %v480
    %1269 = vmatpush1.bf16.msra.mxu0 %v479
    %1270 = vmatprep.subr.bf16.mxu0 %v476
    %1271 = vmatpush1.bf16.msra.mxu0 %v475
    %1272 = vmatprep.subr.bf16.mxu0 %v472
    %1273 = vmatpush1.bf16.msra.mxu0 %v471
    %1274 = vmatprep.subr.bf16.mxu0 %v468
    %1275 = vmatpush1.bf16.msra.mxu0 %v467
    %1276 = vmatprep.subr.bf16.mxu0 %v464
    %1277 = vmatpush1.bf16.msra.mxu0 %v463
    %1278 = vmatprep.subr.bf16.mxu0 %v524
    %1279 = vmatpush2.bf16.msra.mxu0 %v523
    %1280 = vmatprep.subr.bf16.mxu0 %v520
    %1281 = vmatpush2.bf16.msra.mxu0 %v519
    %1282 = vmatprep.subr.bf16.mxu0 %v516
    %1283 = vmatpush2.bf16.msra.mxu0 %v515
    %1284 = vmatprep.subr.bf16.mxu0 %v512
    %1285 = vmatpush2.bf16.msra.mxu0 %v511
    %1286 = vmatprep.subr.bf16.mxu0 %v508
    %1287 = vmatpush2.bf16.msra.mxu0 %v507
    %1288 = vmatprep.subr.bf16.mxu0 %v504
    %1289 = vmatpush2.bf16.msra.mxu0 %v503
    %1290 = vmatprep.subr.bf16.mxu0 %v500
    %1291 = vmatpush2.bf16.msra.mxu0 %v499
    %1292 = vmatprep.subr.bf16.mxu0 %v496
    %1293 = vmatpush2.bf16.msra.mxu0 %v495
    %1294 = vmatprep.mubr.bf16.mxu0 %v1208
    %1295 = vmatmul.mubr.bf16.gmra.mxu0 %v1261
    %v1296 = vpop.f32.mrf.mxu0
    %v1297 = vadd.f32 %v254, %v1296
    %v1298 = vpop.f32.mrf.mxu0
    %v1299 = vadd.f32 %v258, %v1298
    %v1300 = vpop.f32.mrf.mxu0
    %v1301 = vpop.f32.mrf.mxu0
    %1302 = vdwg.mxu0
    %1303 = vmatprep.subr.bf16.mxu0 %v494
    %1304 = vmatpush1.bf16.msra.mxu0 %v493
    %1305 = vmatprep.subr.bf16.mxu0 %v490
    %1306 = vmatpush1.bf16.msra.mxu0 %v489
    %1307 = vmatprep.subr.bf16.mxu0 %v486
    %1308 = vmatpush1.bf16.msra.mxu0 %v485
    %1309 = vmatprep.subr.bf16.mxu0 %v482
    %1310 = vmatpush1.bf16.msra.mxu0 %v481
    %1311 = vmatprep.subr.bf16.mxu0 %v478
    %1312 = vmatpush1.bf16.msra.mxu0 %v477
    %1313 = vmatprep.subr.bf16.mxu0 %v474
    %1314 = vmatpush1.bf16.msra.mxu0 %v473
    %1315 = vmatprep.subr.bf16.mxu0 %v470
    %1316 = vmatpush1.bf16.msra.mxu0 %v469
    %1317 = vmatprep.subr.bf16.mxu0 %v466
    %1318 = vmatpush1.bf16.msra.mxu0 %v465
    %1319 = vmatprep.subr.bf16.mxu0 %v526
    %1320 = vmatpush2.bf16.msra.mxu0 %v525
    %1321 = vmatprep.subr.bf16.mxu0 %v522
    %1322 = vmatpush2.bf16.msra.mxu0 %v521
    %1323 = vmatprep.subr.bf16.mxu0 %v518
    %1324 = vmatpush2.bf16.msra.mxu0 %v517
    %1325 = vmatprep.subr.bf16.mxu0 %v514
    %1326 = vmatpush2.bf16.msra.mxu0 %v513
    %1327 = vmatprep.subr.bf16.mxu0 %v510
    %1328 = vmatpush2.bf16.msra.mxu0 %v509
    %1329 = vmatprep.subr.bf16.mxu0 %v506
    %1330 = vmatpush2.bf16.msra.mxu0 %v505
    %1331 = vmatprep.subr.bf16.mxu0 %v502
    %1332 = vmatpush2.bf16.msra.mxu0 %v501
    %1333 = vmatprep.subr.bf16.mxu0 %v498
    %1334 = vmatpush2.bf16.msra.mxu0 %v497
    %1335 = vmatprep.mubr.bf16.mxu0 %v1208
    %1336 = vmatmul.mubr.bf16.gmra.mxu0 %v1261
    %v1337 = vpop.f32.mrf.mxu0
    %v1338 = vadd.f32 %v262, %v1337
    %v1339 = vpop.f32.mrf.mxu0
    %v1340 = vadd.f32 %v266, %v1339
    %v1341 = vpop.f32.mrf.mxu0
    %v1342 = vpop.f32.mrf.mxu0
    %1343 = vdwg.mxu0
    %v1344 = vxor.u32 %v1297, 2147483648
    %v1345 = vmul.f32 %v1344, 1.442695
    %v1346 = vpow.pop %v1345
    %v1347 = vadd.f32 %v1346, 1.0
    %v1348 = vrcp.pop %v1347
    %v1349 = vmul.f32 1.0, %v1348
    %v1350 = vxor.u32 %v1299, 2147483648
    %v1351 = vmul.f32 %v1350, 1.442695
    %v1352 = vpow.pop %v1351
    %v1353 = vadd.f32 %v1352, 1.0
    %v1354 = vrcp.pop %v1353
    %v1355 = vmul.f32 1.0, %v1354
    %v1356 = vxor.u32 %v1338, 2147483648
    %v1357 = vmul.f32 %v1356, 1.442695
    %v1358 = vpow.pop %v1357
    %v1359 = vadd.f32 %v1358, 1.0
    %v1360 = vrcp.pop %v1359
    %v1361 = vmul.f32 1.0, %v1360
    %v1362 = vxor.u32 %v1340, 2147483648
    %v1363 = vmul.f32 %v1362, 1.442695
    %v1364 = vpow.pop %v1363
    %v1365 = vadd.f32 %v1364, 1.0
    %v1366 = vrcp.pop %v1365
    %v1367 = vmul.f32 1.0, %v1366
    %v1368 = vmul.f32 %v1349, %v1260
    %v1369 = vmul.f32 %v1355, %v1367
    %v1370 = vadd.f32 %v1368, %v1369
    %v1371 = vtanh.pop %v1370
    %v1372 = vmul.f32 %v1361, %v1371
    %s1373 = scalar_lea.vmem [#allocation9], 32
    %1374 = vst [vmem:[%s1373] sm:$0xff] %v1372
    %s1375 = scalar_lea.vmem [#allocation4], 20
    %v1376 = vld [vmem:[%s1375] sm:$0xf]
    %s1377 = scalar_lea.vmem %s1, 40
    %v1378 = vld [vmem:[%s1377] sm:$0xff]
    %v1379 = vpack.c.bf16 %v1370, %v1370
    %1380 = vmatprep.subr.bf16.mxu0 0
    %1381 = vmatpush1.bf16.msra.mxu0 %v191
    %1382 = vmatprep.subr.bf16.mxu0 0
    %1383 = vmatpush1.bf16.msra.mxu0 %v190
    %1384 = vmatprep.subr.bf16.mxu0 0
    %1385 = vmatpush1.bf16.msra.mxu0 %v189
    %1386 = vmatprep.subr.bf16.mxu0 0
    %1387 = vmatpush1.bf16.msra.mxu0 %v188
    %1388 = vmatprep.subr.bf16.mxu0 0
    %1389 = vmatpush1.bf16.msra.mxu0 %v187
    %1390 = vmatprep.subr.bf16.mxu0 0
    %1391 = vmatpush1.bf16.msra.mxu0 %v186
    %1392 = vmatprep.subr.bf16.mxu0 0
    %1393 = vmatpush1.bf16.msra.mxu0 %v185
    %1394 = vmatprep.subr.bf16.mxu0 0
    %1395 = vmatpush1.bf16.msra.mxu0 %v184
    %1396 = vmatprep.subr.bf16.mxu0 0
    %1397 = vmatpush2.bf16.msra.mxu0 0
    %1398 = vmatprep.subr.bf16.mxu0 0
    %1399 = vmatpush2.bf16.msra.mxu0 0
    %1400 = vmatprep.subr.bf16.mxu0 0
    %1401 = vmatpush2.bf16.msra.mxu0 0
    %1402 = vmatprep.subr.bf16.mxu0 0
    %1403 = vmatpush2.bf16.msra.mxu0 0
    %1404 = vmatprep.subr.bf16.mxu0 0
    %1405 = vmatpush2.bf16.msra.mxu0 0
    %1406 = vmatprep.subr.bf16.mxu0 0
    %1407 = vmatpush2.bf16.msra.mxu0 0
    %1408 = vmatprep.subr.bf16.mxu0 0
    %1409 = vmatpush2.bf16.msra.mxu0 0
    %1410 = vmatprep.subr.bf16.mxu0 0
    %1411 = vmatpush2.bf16.msra.mxu0 0
    %1412 = vmatprep.mubr.bf16.mxu0 0
    %1413 = vmatmul.mubr.bf16.gmra.mxu0 %v1379
    %v1414 = vpop.f32.mrf.mxu0
    %v1415 = vadd.f32 %v150, %v1414
    %v1416 = vpop.f32.mrf.mxu0
    %v1417 = vpop.f32.mrf.mxu0
    %v1418 = vpop.f32.mrf.mxu0
    %1419 = vdwg.mxu0
    %v1420 = vtanh.pop %v1415
    %v1421 = vsub.f32 %v1370, %v1420
    %1423 = vset.pattern.permute.xlu0 0
    %1424 = vperm.xlu0 %1423, %v1378
    %v1425 = vpop.permute.xlu0 %1424
    %v1427 = vmul.f32 %v1420, %v1425
    %v1428 = vadd.f32 %v1421, %v1427
    %v1429 = vpack.c.bf16 %v1372, %v1372
    %1430 = vmatprep.subr.bf16.mxu0 %v492
    %1431 = vmatpush1.bf16.msra.mxu0 %v491
    %1432 = vmatprep.subr.bf16.mxu0 %v488
    %1433 = vmatpush1.bf16.msra.mxu0 %v487
    %1434 = vmatprep.subr.bf16.mxu0 %v484
    %1435 = vmatpush1.bf16.msra.mxu0 %v483
    %1436 = vmatprep.subr.bf16.mxu0 %v480
    %1437 = vmatpush1.bf16.msra.mxu0 %v479
    %1438 = vmatprep.subr.bf16.mxu0 %v476
    %1439 = vmatpush1.bf16.msra.mxu0 %v475
    %1440 = vmatprep.subr.bf16.mxu0 %v472
    %1441 = vmatpush1.bf16.msra.mxu0 %v471
    %1442 = vmatprep.subr.bf16.mxu0 %v468
    %1443 = vmatpush1.bf16.msra.mxu0 %v467
    %1444 = vmatprep.subr.bf16.mxu0 %v464
    %1445 = vmatpush1.bf16.msra.mxu0 %v463
    %1446 = vmatprep.subr.bf16.mxu0 %v524
    %1447 = vmatpush2.bf16.msra.mxu0 %v523
    %1448 = vmatprep.subr.bf16.mxu0 %v520
    %1449 = vmatpush2.bf16.msra.mxu0 %v519
    %1450 = vmatprep.subr.bf16.mxu0 %v516
    %1451 = vmatpush2.bf16.msra.mxu0 %v515
    %1452 = vmatprep.subr.bf16.mxu0 %v512
    %1453 = vmatpush2.bf16.msra.mxu0 %v511
    %1454 = vmatprep.subr.bf16.mxu0 %v508
    %1455 = vmatpush2.bf16.msra.mxu0 %v507
    %1456 = vmatprep.subr.bf16.mxu0 %v504
    %1457 = vmatpush2.bf16.msra.mxu0 %v503
    %1458 = vmatprep.subr.bf16.mxu0 %v500
    %1459 = vmatpush2.bf16.msra.mxu0 %v499
    %1460 = vmatprep.subr.bf16.mxu0 %v496
    %1461 = vmatpush2.bf16.msra.mxu0 %v495
    %1462 = vmatprep.mubr.bf16.mxu0 %v1376
    %1463 = vmatmul.mubr.bf16.gmra.mxu0 %v1429
    %v1464 = vpop.f32.mrf.mxu0
    %v1465 = vadd.f32 %v254, %v1464
    %v1466 = vpop.f32.mrf.mxu0
    %v1467 = vadd.f32 %v258, %v1466
    %v1468 = vpop.f32.mrf.mxu0
    %v1469 = vpop.f32.mrf.mxu0
    %1470 = vdwg.mxu0
    %1471 = vmatprep.subr.bf16.mxu0 %v494
    %1472 = vmatpush1.bf16.msra.mxu0 %v493
    %1473 = vmatprep.subr.bf16.mxu0 %v490
    %1474 = vmatpush1.bf16.msra.mxu0 %v489
    %1475 = vmatprep.subr.bf16.mxu0 %v486
    %1476 = vmatpush1.bf16.msra.mxu0 %v485
    %1477 = vmatprep.subr.bf16.mxu0 %v482
    %1478 = vmatpush1.bf16.msra.mxu0 %v481
    %1479 = vmatprep.subr.bf16.mxu0 %v478
    %1480 = vmatpush1.bf16.msra.mxu0 %v477
    %1481 = vmatprep.subr.bf16.mxu0 %v474
    %1482 = vmatpush1.bf16.msra.mxu0 %v473
    %1483 = vmatprep.subr.bf16.mxu0 %v470
    %1484 = vmatpush1.bf16.msra.mxu0 %v469
    %1485 = vmatprep.subr.bf16.mxu0 %v466
    %1486 = vmatpush1.bf16.msra.mxu0 %v465
    %1487 = vmatprep.subr.bf16.mxu0 %v526
    %1488 = vmatpush2.bf16.msra.mxu0 %v525
    %1489 = vmatprep.subr.bf16.mxu0 %v522
    %1490 = vmatpush2.bf16.msra.mxu0 %v521
    %1491 = vmatprep.subr.bf16.mxu0 %v518
    %1492 = vmatpush2.bf16.msra.mxu0 %v517
    %1493 = vmatprep.subr.bf16.mxu0 %v514
    %1494 = vmatpush2.bf16.msra.mxu0 %v513
    %1495 = vmatprep.subr.bf16.mxu0 %v510
    %1496 = vmatpush2.bf16.msra.mxu0 %v509
    %1497 = vmatprep.subr.bf16.mxu0 %v506
    %1498 = vmatpush2.bf16.msra.mxu0 %v505
    %1499 = vmatprep.subr.bf16.mxu0 %v502
    %1500 = vmatpush2.bf16.msra.mxu0 %v501
    %1501 = vmatprep.subr.bf16.mxu0 %v498
    %1502 = vmatpush2.bf16.msra.mxu0 %v497
    %1503 = vmatprep.mubr.bf16.mxu0 %v1376
    %1504 = vmatmul.mubr.bf16.gmra.mxu0 %v1429
    %v1505 = vpop.f32.mrf.mxu0
    %v1506 = vadd.f32 %v262, %v1505
    %v1507 = vpop.f32.mrf.mxu0
    %v1508 = vadd.f32 %v266, %v1507
    %v1509 = vpop.f32.mrf.mxu0
    %v1510 = vpop.f32.mrf.mxu0
    %1511 = vdwg.mxu0
    %v1512 = vxor.u32 %v1465, 2147483648
    %v1513 = vmul.f32 %v1512, 1.442695
    %v1514 = vpow.pop %v1513
    %v1515 = vadd.f32 %v1514, 1.0
    %v1516 = vrcp.pop %v1515
    %v1517 = vmul.f32 1.0, %v1516
    %v1518 = vxor.u32 %v1467, 2147483648
    %v1519 = vmul.f32 %v1518, 1.442695
    %v1520 = vpow.pop %v1519
    %v1521 = vadd.f32 %v1520, 1.0
    %v1522 = vrcp.pop %v1521
    %v1523 = vmul.f32 1.0, %v1522
    %v1524 = vxor.u32 %v1506, 2147483648
    %v1525 = vmul.f32 %v1524, 1.442695
    %v1526 = vpow.pop %v1525
    %v1527 = vadd.f32 %v1526, 1.0
    %v1528 = vrcp.pop %v1527
    %v1529 = vmul.f32 1.0, %v1528
    %v1530 = vxor.u32 %v1508, 2147483648
    %v1531 = vmul.f32 %v1530, 1.442695
    %v1532 = vpow.pop %v1531
    %v1533 = vadd.f32 %v1532, 1.0
    %v1534 = vrcp.pop %v1533
    %v1535 = vmul.f32 1.0, %v1534
    %v1536 = vmul.f32 %v1517, %v1428
    %v1537 = vmul.f32 %v1523, %v1535
    %v1538 = vadd.f32 %v1536, %v1537
    %v1539 = vtanh.pop %v1538
    %v1540 = vmul.f32 %v1529, %v1539
    %s1541 = scalar_lea.vmem [#allocation9], 40
    %1542 = vst [vmem:[%s1541] sm:$0xff] %v1540
    %s1543 = scalar_lea.vmem [#allocation4], 24
    %v1544 = vld [vmem:[%s1543] sm:$0xf]
    %s1545 = scalar_lea.vmem %s1, 48
    %v1546 = vld [vmem:[%s1545] sm:$0xff]
    %v1547 = vpack.c.bf16 %v1538, %v1538
    %1548 = vmatprep.subr.bf16.mxu0 0
    %1549 = vmatpush1.bf16.msra.mxu0 %v191
    %1550 = vmatprep.subr.bf16.mxu0 0
    %1551 = vmatpush1.bf16.msra.mxu0 %v190
    %1552 = vmatprep.subr.bf16.mxu0 0
    %1553 = vmatpush1.bf16.msra.mxu0 %v189
    %1554 = vmatprep.subr.bf16.mxu0 0
    %1555 = vmatpush1.bf16.msra.mxu0 %v188
    %1556 = vmatprep.subr.bf16.mxu0 0
    %1557 = vmatpush1.bf16.msra.mxu0 %v187
    %1558 = vmatprep.subr.bf16.mxu0 0
    %1559 = vmatpush1.bf16.msra.mxu0 %v186
    %1560 = vmatprep.subr.bf16.mxu0 0
    %1561 = vmatpush1.bf16.msra.mxu0 %v185
    %1562 = vmatprep.subr.bf16.mxu0 0
    %1563 = vmatpush1.bf16.msra.mxu0 %v184
    %1564 = vmatprep.subr.bf16.mxu0 0
    %1565 = vmatpush2.bf16.msra.mxu0 0
    %1566 = vmatprep.subr.bf16.mxu0 0
    %1567 = vmatpush2.bf16.msra.mxu0 0
    %1568 = vmatprep.subr.bf16.mxu0 0
    %1569 = vmatpush2.bf16.msra.mxu0 0
    %1570 = vmatprep.subr.bf16.mxu0 0
    %1571 = vmatpush2.bf16.msra.mxu0 0
    %1572 = vmatprep.subr.bf16.mxu0 0
    %1573 = vmatpush2.bf16.msra.mxu0 0
    %1574 = vmatprep.subr.bf16.mxu0 0
    %1575 = vmatpush2.bf16.msra.mxu0 0
    %1576 = vmatprep.subr.bf16.mxu0 0
    %1577 = vmatpush2.bf16.msra.mxu0 0
    %1578 = vmatprep.subr.bf16.mxu0 0
    %1579 = vmatpush2.bf16.msra.mxu0 0
    %1580 = vmatprep.mubr.bf16.mxu0 0
    %1581 = vmatmul.mubr.bf16.gmra.mxu0 %v1547
    %v1582 = vpop.f32.mrf.mxu0
    %v1583 = vadd.f32 %v150, %v1582
    %v1584 = vpop.f32.mrf.mxu0
    %v1585 = vpop.f32.mrf.mxu0
    %v1586 = vpop.f32.mrf.mxu0
    %1587 = vdwg.mxu0
    %v1588 = vtanh.pop %v1583
    %v1589 = vsub.f32 %v1538, %v1588
    %1591 = vset.pattern.permute.xlu0 0
    %1592 = vperm.xlu0 %1591, %v1546
    %v1593 = vpop.permute.xlu0 %1592
    %v1595 = vmul.f32 %v1588, %v1593
    %v1596 = vadd.f32 %v1589, %v1595
    %v1597 = vpack.c.bf16 %v1540, %v1540
    %1598 = vmatprep.subr.bf16.mxu0 %v492
    %1599 = vmatpush1.bf16.msra.mxu0 %v491
    %1600 = vmatprep.subr.bf16.mxu0 %v488
    %1601 = vmatpush1.bf16.msra.mxu0 %v487
    %1602 = vmatprep.subr.bf16.mxu0 %v484
    %1603 = vmatpush1.bf16.msra.mxu0 %v483
    %1604 = vmatprep.subr.bf16.mxu0 %v480
    %1605 = vmatpush1.bf16.msra.mxu0 %v479
    %1606 = vmatprep.subr.bf16.mxu0 %v476
    %1607 = vmatpush1.bf16.msra.mxu0 %v475
    %1608 = vmatprep.subr.bf16.mxu0 %v472
    %1609 = vmatpush1.bf16.msra.mxu0 %v471
    %1610 = vmatprep.subr.bf16.mxu0 %v468
    %1611 = vmatpush1.bf16.msra.mxu0 %v467
    %1612 = vmatprep.subr.bf16.mxu0 %v464
    %1613 = vmatpush1.bf16.msra.mxu0 %v463
    %1614 = vmatprep.subr.bf16.mxu0 %v524
    %1615 = vmatpush2.bf16.msra.mxu0 %v523
    %1616 = vmatprep.subr.bf16.mxu0 %v520
    %1617 = vmatpush2.bf16.msra.mxu0 %v519
    %1618 = vmatprep.subr.bf16.mxu0 %v516
    %1619 = vmatpush2.bf16.msra.mxu0 %v515
    %1620 = vmatprep.subr.bf16.mxu0 %v512
    %1621 = vmatpush2.bf16.msra.mxu0 %v511
    %1622 = vmatprep.subr.bf16.mxu0 %v508
    %1623 = vmatpush2.bf16.msra.mxu0 %v507
    %1624 = vmatprep.subr.bf16.mxu0 %v504
    %1625 = vmatpush2.bf16.msra.mxu0 %v503
    %1626 = vmatprep.subr.bf16.mxu0 %v500
    %1627 = vmatpush2.bf16.msra.mxu0 %v499
    %1628 = vmatprep.subr.bf16.mxu0 %v496
    %1629 = vmatpush2.bf16.msra.mxu0 %v495
    %1630 = vmatprep.mubr.bf16.mxu0 %v1544
    %1631 = vmatmul.mubr.bf16.gmra.mxu0 %v1597
    %v1632 = vpop.f32.mrf.mxu0
    %v1633 = vadd.f32 %v254, %v1632
    %v1634 = vpop.f32.mrf.mxu0
    %v1635 = vadd.f32 %v258, %v1634
    %v1636 = vpop.f32.mrf.mxu0
    %v1637 = vpop.f32.mrf.mxu0
    %1638 = vdwg.mxu0
    %1639 = vmatprep.subr.bf16.mxu0 %v494
    %1640 = vmatpush1.bf16.msra.mxu0 %v493
    %1641 = vmatprep.subr.bf16.mxu0 %v490
    %1642 = vmatpush1.bf16.msra.mxu0 %v489
    %1643 = vmatprep.subr.bf16.mxu0 %v486
    %1644 = vmatpush1.bf16.msra.mxu0 %v485
    %1645 = vmatprep.subr.bf16.mxu0 %v482
    %1646 = vmatpush1.bf16.msra.mxu0 %v481
    %1647 = vmatprep.subr.bf16.mxu0 %v478
    %1648 = vmatpush1.bf16.msra.mxu0 %v477
    %1649 = vmatprep.subr.bf16.mxu0 %v474
    %1650 = vmatpush1.bf16.msra.mxu0 %v473
    %1651 = vmatprep.subr.bf16.mxu0 %v470
    %1652 = vmatpush1.bf16.msra.mxu0 %v469
    %1653 = vmatprep.subr.bf16.mxu0 %v466
    %1654 = vmatpush1.bf16.msra.mxu0 %v465
    %1655 = vmatprep.subr.bf16.mxu0 %v526
    %1656 = vmatpush2.bf16.msra.mxu0 %v525
    %1657 = vmatprep.subr.bf16.mxu0 %v522
    %1658 = vmatpush2.bf16.msra.mxu0 %v521
    %1659 = vmatprep.subr.bf16.mxu0 %v518
    %1660 = vmatpush2.bf16.msra.mxu0 %v517
    %1661 = vmatprep.subr.bf16.mxu0 %v514
    %1662 = vmatpush2.bf16.msra.mxu0 %v513
    %1663 = vmatprep.subr.bf16.mxu0 %v510
    %1664 = vmatpush2.bf16.msra.mxu0 %v509
    %1665 = vmatprep.subr.bf16.mxu0 %v506
    %1666 = vmatpush2.bf16.msra.mxu0 %v505
    %1667 = vmatprep.subr.bf16.mxu0 %v502
    %1668 = vmatpush2.bf16.msra.mxu0 %v501
    %1669 = vmatprep.subr.bf16.mxu0 %v498
    %1670 = vmatpush2.bf16.msra.mxu0 %v497
    %1671 = vmatprep.mubr.bf16.mxu0 %v1544
    %1672 = vmatmul.mubr.bf16.gmra.mxu0 %v1597
    %v1673 = vpop.f32.mrf.mxu0
    %v1674 = vadd.f32 %v262, %v1673
    %v1675 = vpop.f32.mrf.mxu0
    %v1676 = vadd.f32 %v266, %v1675
    %v1677 = vpop.f32.mrf.mxu0
    %v1678 = vpop.f32.mrf.mxu0
    %1679 = vdwg.mxu0
    %v1680 = vxor.u32 %v1633, 2147483648
    %v1681 = vmul.f32 %v1680, 1.442695
    %v1682 = vpow.pop %v1681
    %v1683 = vadd.f32 %v1682, 1.0
    %v1684 = vrcp.pop %v1683
    %v1685 = vmul.f32 1.0, %v1684
    %v1686 = vxor.u32 %v1635, 2147483648
    %v1687 = vmul.f32 %v1686, 1.442695
    %v1688 = vpow.pop %v1687
    %v1689 = vadd.f32 %v1688, 1.0
    %v1690 = vrcp.pop %v1689
    %v1691 = vmul.f32 1.0, %v1690
    %v1692 = vxor.u32 %v1674, 2147483648
    %v1693 = vmul.f32 %v1692, 1.442695
    %v1694 = vpow.pop %v1693
    %v1695 = vadd.f32 %v1694, 1.0
    %v1696 = vrcp.pop %v1695
    %v1697 = vmul.f32 1.0, %v1696
    %v1698 = vxor.u32 %v1676, 2147483648
    %v1699 = vmul.f32 %v1698, 1.442695
    %v1700 = vpow.pop %v1699
    %v1701 = vadd.f32 %v1700, 1.0
    %v1702 = vrcp.pop %v1701
    %v1703 = vmul.f32 1.0, %v1702
    %v1704 = vmul.f32 %v1685, %v1596
    %v1705 = vmul.f32 %v1691, %v1703
    %v1706 = vadd.f32 %v1704, %v1705
    %v1707 = vtanh.pop %v1706
    %v1708 = vmul.f32 %v1697, %v1707
    %s1709 = scalar_lea.vmem [#allocation9], 48
    %1710 = vst [vmem:[%s1709] sm:$0xff] %v1708
    %s1711 = scalar_lea.vmem [#allocation4], 28
    %v1712 = vld [vmem:[%s1711] sm:$0xf]
    %s1713 = scalar_lea.vmem %s1, 56
    %v1714 = vld [vmem:[%s1713] sm:$0xff]
    %v1715 = vpack.c.bf16 %v1706, %v1706
    %1716 = vmatprep.subr.bf16.mxu0 0
    %1717 = vmatpush1.bf16.msra.mxu0 %v191
    %1718 = vmatprep.subr.bf16.mxu0 0
    %1719 = vmatpush1.bf16.msra.mxu0 %v190
    %1720 = vmatprep.subr.bf16.mxu0 0
    %1721 = vmatpush1.bf16.msra.mxu0 %v189
    %1722 = vmatprep.subr.bf16.mxu0 0
    %1723 = vmatpush1.bf16.msra.mxu0 %v188
    %1724 = vmatprep.subr.bf16.mxu0 0
    %1725 = vmatpush1.bf16.msra.mxu0 %v187
    %1726 = vmatprep.subr.bf16.mxu0 0
    %1727 = vmatpush1.bf16.msra.mxu0 %v186
    %1728 = vmatprep.subr.bf16.mxu0 0
    %1729 = vmatpush1.bf16.msra.mxu0 %v185
    %1730 = vmatprep.subr.bf16.mxu0 0
    %1731 = vmatpush1.bf16.msra.mxu0 %v184
    %1732 = vmatprep.subr.bf16.mxu0 0
    %1733 = vmatpush2.bf16.msra.mxu0 0
    %1734 = vmatprep.subr.bf16.mxu0 0
    %1735 = vmatpush2.bf16.msra.mxu0 0
    %1736 = vmatprep.subr.bf16.mxu0 0
    %1737 = vmatpush2.bf16.msra.mxu0 0
    %1738 = vmatprep.subr.bf16.mxu0 0
    %1739 = vmatpush2.bf16.msra.mxu0 0
    %1740 = vmatprep.subr.bf16.mxu0 0
    %1741 = vmatpush2.bf16.msra.mxu0 0
    %1742 = vmatprep.subr.bf16.mxu0 0
    %1743 = vmatpush2.bf16.msra.mxu0 0
    %1744 = vmatprep.subr.bf16.mxu0 0
    %1745 = vmatpush2.bf16.msra.mxu0 0
    %1746 = vmatprep.subr.bf16.mxu0 0
    %1747 = vmatpush2.bf16.msra.mxu0 0
    %1748 = vmatprep.mubr.bf16.mxu0 0
    %1749 = vmatmul.mubr.bf16.gmra.mxu0 %v1715
    %v1750 = vpop.f32.mrf.mxu0
    %v1751 = vadd.f32 %v150, %v1750
    %v1752 = vpop.f32.mrf.mxu0
    %v1753 = vpop.f32.mrf.mxu0
    %v1754 = vpop.f32.mrf.mxu0
    %1755 = vdwg.mxu0
    %v1756 = vtanh.pop %v1751
    %v1757 = vsub.f32 %v1706, %v1756
    %1759 = vset.pattern.permute.xlu0 0
    %1760 = vperm.xlu0 %1759, %v1714
    %v1761 = vpop.permute.xlu0 %1760
    %v1763 = vmul.f32 %v1756, %v1761
    %v1764 = vadd.f32 %v1757, %v1763
    %v1765 = vpack.c.bf16 %v1708, %v1708
    %1766 = vmatprep.subr.bf16.mxu0 %v492
    %1767 = vmatpush1.bf16.msra.mxu0 %v491
    %1768 = vmatprep.subr.bf16.mxu0 %v488
    %1769 = vmatpush1.bf16.msra.mxu0 %v487
    %1770 = vmatprep.subr.bf16.mxu0 %v484
    %1771 = vmatpush1.bf16.msra.mxu0 %v483
    %1772 = vmatprep.subr.bf16.mxu0 %v480
    %1773 = vmatpush1.bf16.msra.mxu0 %v479
    %1774 = vmatprep.subr.bf16.mxu0 %v476
    %1775 = vmatpush1.bf16.msra.mxu0 %v475
    %1776 = vmatprep.subr.bf16.mxu0 %v472
    %1777 = vmatpush1.bf16.msra.mxu0 %v471
    %1778 = vmatprep.subr.bf16.mxu0 %v468
    %1779 = vmatpush1.bf16.msra.mxu0 %v467
    %1780 = vmatprep.subr.bf16.mxu0 %v464
    %1781 = vmatpush1.bf16.msra.mxu0 %v463
    %1782 = vmatprep.subr.bf16.mxu0 %v524
    %1783 = vmatpush2.bf16.msra.mxu0 %v523
    %1784 = vmatprep.subr.bf16.mxu0 %v520
    %1785 = vmatpush2.bf16.msra.mxu0 %v519
    %1786 = vmatprep.subr.bf16.mxu0 %v516
    %1787 = vmatpush2.bf16.msra.mxu0 %v515
    %1788 = vmatprep.subr.bf16.mxu0 %v512
    %1789 = vmatpush2.bf16.msra.mxu0 %v511
    %1790 = vmatprep.subr.bf16.mxu0 %v508
    %1791 = vmatpush2.bf16.msra.mxu0 %v507
    %1792 = vmatprep.subr.bf16.mxu0 %v504
    %1793 = vmatpush2.bf16.msra.mxu0 %v503
    %1794 = vmatprep.subr.bf16.mxu0 %v500
    %1795 = vmatpush2.bf16.msra.mxu0 %v499
    %1796 = vmatprep.subr.bf16.mxu0 %v496
    %1797 = vmatpush2.bf16.msra.mxu0 %v495
    %1798 = vmatprep.mubr.bf16.mxu0 %v1712
    %1799 = vmatmul.mubr.bf16.gmra.mxu0 %v1765
    %v1800 = vpop.f32.mrf.mxu0
    %v1801 = vadd.f32 %v254, %v1800
    %v1802 = vpop.f32.mrf.mxu0
    %v1803 = vadd.f32 %v258, %v1802
    %v1804 = vpop.f32.mrf.mxu0
    %v1805 = vpop.f32.mrf.mxu0
    %1806 = vdwg.mxu0
    %1807 = vmatprep.subr.bf16.mxu0 %v494
    %1808 = vmatpush1.bf16.msra.mxu0 %v493
    %1809 = vmatprep.subr.bf16.mxu0 %v490
    %1810 = vmatpush1.bf16.msra.mxu0 %v489
    %1811 = vmatprep.subr.bf16.mxu0 %v486
    %1812 = vmatpush1.bf16.msra.mxu0 %v485
    %1813 = vmatprep.subr.bf16.mxu0 %v482
    %1814 = vmatpush1.bf16.msra.mxu0 %v481
    %1815 = vmatprep.subr.bf16.mxu0 %v478
    %1816 = vmatpush1.bf16.msra.mxu0 %v477
    %1817 = vmatprep.subr.bf16.mxu0 %v474
    %1818 = vmatpush1.bf16.msra.mxu0 %v473
    %1819 = vmatprep.subr.bf16.mxu0 %v470
    %1820 = vmatpush1.bf16.msra.mxu0 %v469
    %1821 = vmatprep.subr.bf16.mxu0 %v466
    %1822 = vmatpush1.bf16.msra.mxu0 %v465
    %1823 = vmatprep.subr.bf16.mxu0 %v526
    %1824 = vmatpush2.bf16.msra.mxu0 %v525
    %1825 = vmatprep.subr.bf16.mxu0 %v522
    %1826 = vmatpush2.bf16.msra.mxu0 %v521
    %1827 = vmatprep.subr.bf16.mxu0 %v518
    %1828 = vmatpush2.bf16.msra.mxu0 %v517
    %1829 = vmatprep.subr.bf16.mxu0 %v514
    %1830 = vmatpush2.bf16.msra.mxu0 %v513
    %1831 = vmatprep.subr.bf16.mxu0 %v510
    %1832 = vmatpush2.bf16.msra.mxu0 %v509
    %1833 = vmatprep.subr.bf16.mxu0 %v506
    %1834 = vmatpush2.bf16.msra.mxu0 %v505
    %1835 = vmatprep.subr.bf16.mxu0 %v502
    %1836 = vmatpush2.bf16.msra.mxu0 %v501
    %1837 = vmatprep.subr.bf16.mxu0 %v498
    %1838 = vmatpush2.bf16.msra.mxu0 %v497
    %1839 = vmatprep.mubr.bf16.mxu0 %v1712
    %1840 = vmatmul.mubr.bf16.gmra.mxu0 %v1765
    %v1841 = vpop.f32.mrf.mxu0
    %v1842 = vadd.f32 %v262, %v1841
    %v1843 = vpop.f32.mrf.mxu0
    %v1844 = vadd.f32 %v266, %v1843
    %v1845 = vpop.f32.mrf.mxu0
    %v1846 = vpop.f32.mrf.mxu0
    %1847 = vdwg.mxu0
    %v1848 = vxor.u32 %v1801, 2147483648
    %v1849 = vmul.f32 %v1848, 1.442695
    %v1850 = vpow.pop %v1849
    %v1851 = vadd.f32 %v1850, 1.0
    %v1852 = vrcp.pop %v1851
    %v1853 = vmul.f32 1.0, %v1852
    %v1854 = vxor.u32 %v1803, 2147483648
    %v1855 = vmul.f32 %v1854, 1.442695
    %v1856 = vpow.pop %v1855
    %v1857 = vadd.f32 %v1856, 1.0
    %v1858 = vrcp.pop %v1857
    %v1859 = vmul.f32 1.0, %v1858
    %v1860 = vxor.u32 %v1842, 2147483648
    %v1861 = vmul.f32 %v1860, 1.442695
    %v1862 = vpow.pop %v1861
    %v1863 = vadd.f32 %v1862, 1.0
    %v1864 = vrcp.pop %v1863
    %v1865 = vmul.f32 1.0, %v1864
    %v1866 = vxor.u32 %v1844, 2147483648
    %v1867 = vmul.f32 %v1866, 1.442695
    %v1868 = vpow.pop %v1867
    %v1869 = vadd.f32 %v1868, 1.0
    %v1870 = vrcp.pop %v1869
    %v1871 = vmul.f32 1.0, %v1870
    %v1872 = vmul.f32 %v1853, %v1764
    %v1873 = vmul.f32 %v1859, %v1871
    %v1874 = vadd.f32 %v1872, %v1873
    %v1875 = vtanh.pop %v1874
    %v1876 = vmul.f32 %v1865, %v1875
    %s1877 = scalar_lea.vmem [#allocation9], 56
    %1878 = vst [vmem:[%s1877] sm:$0xff] %v1876
    %1879 = vst [vmem:[#allocation2] sm:$0xff] %v1876
    %1880 = vst [vmem:[#allocation3] sm:$0xff] %v1874
    // Predicated region
    $region38: #{tpu_custom_call.1} parent=1 // pred_check
      _
    $region39: #{tpu_custom_call.1} parent=1 // pred_check_branch
      %1882 = sbr.rel (0) target = $region41
    $region40: #{tpu_custom_call.1} parent=1 // pred_region
      %s1884 = ssub.s32 1024, 1024
      %1885 = vsyncadd [#allocation6], %s1884
      %s1886 = sshll.u32 [#allocation9], 4
      %s1887 = int_to_ptr.vmem [resolvable:$true] %s1886
      %1892 = dma.vmem_to_hbm [thread:$0]  %s1887, 1024, %s6, [#allocation6], 128, 128, 8
    $region41: #{tpu_custom_call.1} parent=1 // pred_fallthru
      _
    // Predicated region
    $region42: #{tpu_custom_call.1} parent=1 // pred_check
      _
    $region43: #{tpu_custom_call.1} parent=1 // pred_check_branch
      %1894 = sbr.rel (0) target = $region45
    $region44: #{tpu_custom_call.1} parent=1 // pred_region
      %1895 = dma.done [#allocation6], 1024
    $region45: #{tpu_custom_call.1} parent=1 // pred_fallthru
      _
    %1896 = vsyncpa [#allocation5], 1
    %1897 = vsyncpa [#allocation8], 1
    %1898 = vsyncpa [#allocation6], 1

</llo_original>
